<compile_context>
chip_gen: v5e
topology: v5e:2x2
jax: 0.10.0
libtpu: 0.0.40
codegen_flags: <defaults>
</compile_context>

<pallas_src>
import jax
import jax.numpy as jnp
from jax.experimental import pallas as pl
from jax.experimental.pallas import tpu as pltpu

NUM_HEADS = 8
LANE = 128


def _superior_attention_kernel(x_ref, wcat_ref, bcat_ref, w2_ref, b2_ref, o_ref):
    F = o_ref.shape[-1]
    x = x_ref[...]                                       # (TB, F), f32
    x_bf = x.astype(jnp.bfloat16)

    # One MXU pass of x against the concatenated [W_attn | W1_pad] weight.
    y = jnp.dot(x_bf, wcat_ref[...],
                preferred_element_type=jnp.float32) + bcat_ref[...]   # (TB, F+HPAD)

    attn = y[:, :F]                                      # folded value+out projection
    h = jnp.maximum(y[:, F:], 0.0)                       # ReLU, full 128-lane tile

    cw = jax.nn.sigmoid(
        jnp.dot(h.astype(jnp.bfloat16), w2_ref[...],
                preferred_element_type=jnp.float32) + b2_ref[...])

    o_ref[...] = (x * cw + attn).astype(o_ref.dtype)


def _choose_block_b(B):
    """Memory-bound kernel: biggest row tile that is sane.

    Single grid step for B <= 1024 (no benefit from splitting on 1-TC chips);
    512-row tiles above that so v7x megacore still gets >=2 parallel steps.
    """
    b_padded = 8 * pl.cdiv(B, 8)
    if b_padded <= 1024:
        return int(b_padded)
    return 512


def superior_attention(x, params, *, block_b=None):
    B, F = x.shape
    hpad = params["w2"].shape[0]                         # padded hidden (multiple of 128)
    if block_b is None:
        block_b = _choose_block_b(B)
    grid = (pl.cdiv(B, block_b),)

    def _build(single_buffer_weights):
        def _full(shape):
            if single_buffer_weights:
                # Grid-invariant inputs: DMA'd once, one VMEM buffer is enough.
                return pl.BlockSpec(shape, lambda i: (0, 0),
                                    pipeline_mode=pl.Buffered(1))
            return pl.BlockSpec(shape, lambda i: (0, 0))

        in_specs = [
            pl.BlockSpec((block_b, F), lambda i: (i, 0)),   # x (pipelined)
            _full((F, F + hpad)),                           # [W_attn | W1_pad] bf16
            _full((1, F + hpad)),                           # [b_attn | b1_pad] f32
            _full((hpad, F)),                               # W2_pad bf16
            _full((1, F)),                                  # b2 f32
        ]
        out_specs = pl.BlockSpec((block_b, F), lambda i: (i, 0))

        # VMEM budget derived from the actual buffer plan.
        weight_bytes = (F * (F + hpad) * 2 + (F + hpad) * 4
                        + hpad * F * 2 + F * 4)
        if not single_buffer_weights:
            weight_bytes *= 2
        io_bytes = 2 * 2 * block_b * F * 4                  # x + out, double-buffered
        vmem_limit = int(weight_bytes + io_bytes + (8 << 20))  # + Mosaic scratch headroom

        return pl.pallas_call(
            _superior_attention_kernel,
            out_shape=jax.ShapeDtypeStruct((B, F), x.dtype),
            grid_spec=pltpu.PrefetchScalarGridSpec(
                num_scalar_prefetch=0,
                grid=grid,
                in_specs=in_specs,
                out_specs=out_specs,
            ),
            compiler_params=pltpu.CompilerParams(
                dimension_semantics=("parallel",),
                vmem_limit_bytes=vmem_limit),
            input_output_aliases={0: 0},
        )

    args = (x, params["w_cat"], params["b_cat"], params["w2"], params["b2"])
    try:
        return _build(True)(*args)
    except Exception:
        # Conservative fallback if Buffered(1) is rejected by this Pallas build.
        return _build(False)(*args)


def init_params(key, F):
    """Deterministic synthetic parameters.

    Returns (kernel_params, ref_params). Kernel params are pre-transposed bf16,
    with the MHA out-projection folded into the value projection, the attention
    weight and the (128-lane zero-padded) channel-MLP first layer concatenated
    along the output dim. Ref params keep the PyTorch-convention tensors.
    """
    hidden = F // 16
    hpad = LANE * pl.cdiv(hidden, LANE)
    ks = jax.random.split(key, 8)
    std = 0.02
    # PyTorch conventions: Linear weight is (out, in); MHA in_proj is (3F, F).
    in_proj_w = jax.random.normal(ks[0], (3 * F, F), jnp.float32) * std
    in_proj_b = jax.random.normal(ks[1], (3 * F,), jnp.float32) * std
    out_proj_w = jax.random.normal(ks[2], (F, F), jnp.float32) * std
    out_proj_b = jax.random.normal(ks[3], (F,), jnp.float32) * std
    w1 = jax.random.normal(ks[4], (hidden, F), jnp.float32) * std
    b1 = jax.random.normal(ks[5], (hidden,), jnp.float32) * std
    w2 = jax.random.normal(ks[6], (F, hidden), jnp.float32) * std
    b2 = jax.random.normal(ks[7], (F,), jnp.float32) * std

    # Fold out-projection into the value projection (exact linear composition):
    #   attn = (x @ Wv^T + bv) @ Wo^T + bo = x @ (Wv^T Wo^T) + (bv Wo^T + bo)
    wv = in_proj_w[2 * F:, :]                      # (F, F)
    bv = in_proj_b[2 * F:]                         # (F,)
    w_attn = wv.T @ out_proj_w.T                   # (F, F)
    b_attn = bv @ out_proj_w.T + out_proj_b        # (F,)

    # Zero-pad the channel-MLP hidden dim to a full 128-lane tile (exact: the
    # padded hidden units see zero weights and zero bias, then zero W2 rows).
    w1_pad = jnp.zeros((F, hpad), jnp.float32).at[:, :hidden].set(w1.T)
    b1_pad = jnp.zeros((hpad,), jnp.float32).at[:hidden].set(b1)
    w2_pad = jnp.zeros((hpad, F), jnp.float32).at[:hidden, :].set(w2.T)

    kernel_params = {
        "w_cat": jnp.concatenate([w_attn, w1_pad], axis=1).astype(jnp.bfloat16),  # (F, F+hpad)
        "b_cat": jnp.concatenate([b_attn, b1_pad])[None, :].astype(jnp.float32),  # (1, F+hpad)
        "w2": w2_pad.astype(jnp.bfloat16),                                         # (hpad, F)
        "b2": b2[None, :].astype(jnp.float32),                                     # (1, F)
    }
    ref_params = {
        "in_proj_w": in_proj_w, "in_proj_b": in_proj_b,
        "out_proj_w": out_proj_w, "out_proj_b": out_proj_b,
        "w1": w1, "b1": b1, "w2": w2, "b2": b2,
    }
    return kernel_params, ref_params


def reference(x, p):
    """Pure-JAX f32 reference mirroring the full PyTorch forward (seq_len == 1)."""
    B, F = x.shape
    head_dim = F // NUM_HEADS
    qkv = x @ p["in_proj_w"].T + p["in_proj_b"]
    q, k, v = qkv[:, :F], qkv[:, F:2 * F], qkv[:, 2 * F:]
    qh = q.reshape(B, NUM_HEADS, 1, head_dim)
    kh = k.reshape(B, NUM_HEADS, 1, head_dim)
    vh = v.reshape(B, NUM_HEADS, 1, head_dim)
    scores = (qh @ jnp.swapaxes(kh, -1, -2)) / jnp.sqrt(float(head_dim))  # (B,H,1,1)
    attn_w = jax.nn.softmax(scores, axis=-1)                              # == 1 exactly
    attn_h = (attn_w @ vh).reshape(B, F)
    attn = attn_h @ p["out_proj_w"].T + p["out_proj_b"]
    h = jnp.maximum(x @ p["w1"].T + p["b1"], 0.0)
    cw = jax.nn.sigmoid(h @ p["w2"].T + p["b2"])
    return x * cw + attn


if __name__ == "__main__":
    key = jax.random.PRNGKey(0)
    B, F = 256, 128                 # 8 heads of dim 16, channel-attention hidden = 8
    kparams, rparams = init_params(key, F)
    x = jax.random.normal(jax.random.fold_in(key, 99), (B, F), jnp.float32)

    # Reference computed before the kernel call (output aliases x's buffer).
    ref = jax.block_until_ready(reference(x, rparams))

    out = superior_attention(x, kparams)
    out = jax.block_until_ready(out)

    assert out.shape == (B, F) and out.dtype == jnp.float32
    err = float(jnp.max(jnp.abs(out - ref)))
    assert err < 2e-2, err          # bf16-matmul tolerance
    print("KERNEL_OK")
</pallas_src>

<mosaic_0001>
module attributes {stable_mosaic.version = 11 : i64} {
  func.func @_superior_attention_kernel(%arg0: i32, %arg1: memref<256x128xf32, #tpu.memory_space<vmem>>, %arg2: memref<128x256xbf16, #tpu.memory_space<vmem>>, %arg3: memref<1x256xf32, #tpu.memory_space<vmem>>, %arg4: memref<128x128xbf16, #tpu.memory_space<vmem>>, %arg5: memref<1x128xf32, #tpu.memory_space<vmem>>, %arg6: memref<256x128xf32, #tpu.memory_space<vmem>>) attributes {dimension_semantics = [#tpu.dimension_semantics<parallel>], iteration_bounds = array<i64: 1>, scalar_prefetch = 0 : i64, scratch_operands = 0 : i64, tpu.core_type = #tpu.core_type<tc>, window_params = [{transform_indices = @transform_0, window_bounds = array<i64: 256, 128>}, {pipeline_mode = #tpu.pipeline_mode<synchronous>, transform_indices = @transform_1, window_bounds = array<i64: 128, 256>}, {pipeline_mode = #tpu.pipeline_mode<synchronous>, transform_indices = @transform_2, window_bounds = array<i64: 1, 256>}, {pipeline_mode = #tpu.pipeline_mode<synchronous>, transform_indices = @transform_3, window_bounds = array<i64: 128, 128>}, {pipeline_mode = #tpu.pipeline_mode<synchronous>, transform_indices = @transform_4, window_bounds = array<i64: 1, 128>}, {transform_indices = @transform_5, window_bounds = array<i64: 256, 128>}]} {
    %c0 = arith.constant 0 : index
    %c0_0 = arith.constant 0 : index
    %0 = vector.load %arg1[%c0, %c0_0] : memref<256x128xf32, #tpu.memory_space<vmem>>, vector<256x128xf32>
    %1 = arith.truncf %0 : vector<256x128xf32> to vector<256x128xbf16>
    %c0_1 = arith.constant 0 : index
    %c0_2 = arith.constant 0 : index
    %2 = vector.load %arg2[%c0_1, %c0_2] : memref<128x256xbf16, #tpu.memory_space<vmem>>, vector<128x256xbf16>
    %cst = arith.constant dense<0.000000e+00> : vector<256x256xf32>
    %3 = tpu.matmul %1, %2, %cst {dimension_numbers = #tpu.dot_dimension_numbers<[1], [0], [0], [1], [0, 0, 1, 1], [], []>} : vector<256x128xbf16>, vector<128x256xbf16>, vector<256x256xf32> -> vector<256x256xf32>
    %c0_3 = arith.constant 0 : index
    %c0_4 = arith.constant 0 : index
    %4 = vector.load %arg3[%c0_3, %c0_4] : memref<1x256xf32, #tpu.memory_space<vmem>>, vector<1x256xf32>
    %5 = vector.broadcast %4 : vector<1x256xf32> to vector<256x256xf32>
    %6 = arith.addf %3, %5 : vector<256x256xf32>
    %7 = vector.extract_strided_slice %6 {offsets = [0, 0], sizes = [256, 128], strides = [1, 1]} : vector<256x256xf32> to vector<256x128xf32>
    %8 = vector.extract_strided_slice %6 {offsets = [0, 128], sizes = [256, 128], strides = [1, 1]} : vector<256x256xf32> to vector<256x128xf32>
    %cst_5 = arith.constant 0.000000e+00 : f32
    %9 = vector.broadcast %cst_5 : f32 to vector<256x128xf32>
    %10 = arith.maximumf %8, %9 : vector<256x128xf32>
    %11 = arith.truncf %10 : vector<256x128xf32> to vector<256x128xbf16>
    %c0_6 = arith.constant 0 : index
    %c0_7 = arith.constant 0 : index
    %12 = vector.load %arg4[%c0_6, %c0_7] : memref<128x128xbf16, #tpu.memory_space<vmem>>, vector<128x128xbf16>
    %cst_8 = arith.constant dense<0.000000e+00> : vector<256x128xf32>
    %13 = tpu.matmul %11, %12, %cst_8 {dimension_numbers = #tpu.dot_dimension_numbers<[1], [0], [0], [1], [0, 0, 1, 1], [], []>} : vector<256x128xbf16>, vector<128x128xbf16>, vector<256x128xf32> -> vector<256x128xf32>
    %c0_9 = arith.constant 0 : index
    %c0_10 = arith.constant 0 : index
    %14 = vector.load %arg5[%c0_9, %c0_10] : memref<1x128xf32, #tpu.memory_space<vmem>>, vector<1x128xf32>
    %15 = vector.broadcast %14 : vector<1x128xf32> to vector<256x128xf32>
    %16 = arith.addf %13, %15 : vector<256x128xf32>
    %17 = arith.negf %16 : vector<256x128xf32>
    %18 = math.exp %17 : vector<256x128xf32>
    %cst_11 = arith.constant 1.000000e+00 : f32
    %19 = vector.broadcast %cst_11 : f32 to vector<256x128xf32>
    %20 = arith.addf %19, %18 : vector<256x128xf32>
    %21 = arith.divf %19, %20 : vector<256x128xf32>
    %22 = arith.mulf %0, %21 : vector<256x128xf32>
    %23 = arith.addf %22, %7 : vector<256x128xf32>
    %c0_12 = arith.constant 0 : index
    %c0_13 = arith.constant 0 : index
    %24 = vector.load %arg6[%c0_12, %c0_13] : memref<256x128xf32, #tpu.memory_space<vmem>>, vector<256x128xf32>
    tpu.vector_store %arg6[%c0_12, %c0_13], %23 {strides = array<i32>} : memref<256x128xf32, #tpu.memory_space<vmem>>, vector<256x128xf32>,
    return
  }
  func.func @transform_0(%arg0: i32) -> (i32, i32) {
    %c0_i32 = arith.constant 0 : i32
    %c0_i32_0 = arith.constant 0 : i32
    return %arg0, %c0_i32 : i32, i32
  }
  func.func @transform_1(%arg0: i32) -> (i32, i32) {
    %c0_i32 = arith.constant 0 : i32
    %c0_i32_0 = arith.constant 0 : i32
    %c0_i32_1 = arith.constant 0 : i32
    return %c0_i32, %c0_i32_0 : i32, i32
  }
  func.func @transform_2(%arg0: i32) -> (i32, i32) {
    %c0_i32 = arith.constant 0 : i32
    %c0_i32_0 = arith.constant 0 : i32
    %c0_i32_1 = arith.constant 0 : i32
    return %c0_i32, %c0_i32_0 : i32, i32
  }
  func.func @transform_3(%arg0: i32) -> (i32, i32) {
    %c0_i32 = arith.constant 0 : i32
    %c0_i32_0 = arith.constant 0 : i32
    %c0_i32_1 = arith.constant 0 : i32
    return %c0_i32, %c0_i32_0 : i32, i32
  }
  func.func @transform_4(%arg0: i32) -> (i32, i32) {
    %c0_i32 = arith.constant 0 : i32
    %c0_i32_0 = arith.constant 0 : i32
    %c0_i32_1 = arith.constant 0 : i32
    return %c0_i32, %c0_i32_0 : i32, i32
  }
  func.func @transform_5(%arg0: i32) -> (i32, i32) {
    %c0_i32 = arith.constant 0 : i32
    %c0_i32_0 = arith.constant 0 : i32
    return %arg0, %c0_i32 : i32, i32
  }
}

module attributes {stable_mosaic.version = 11 : i64} {
  func.func @_superior_attention_kernel(%arg0: i32, %arg1: memref<256x128xf32, #tpu.memory_space<vmem>>, %arg2: memref<128x256xbf16, #tpu.memory_space<vmem>>, %arg3: memref<1x256xf32, #tpu.memory_space<vmem>>, %arg4: memref<128x128xbf16, #tpu.memory_space<vmem>>, %arg5: memref<1x128xf32, #tpu.memory_space<vmem>>, %arg6: memref<256x128xf32, #tpu.memory_space<vmem>>) attributes {dimension_semantics = [#tpu.dimension_semantics<parallel>], iteration_bounds = array<i64: 1>, scalar_prefetch = 0 : i64, scratch_operands = 0 : i64, tpu.core_type = #tpu.core_type<tc>, window_params = [{transform_indices = @transform_0, window_bounds = array<i64: 256, 128>}, {pipeline_mode = #tpu.pipeline_mode<synchronous>, transform_indices = @transform_1, window_bounds = array<i64: 128, 256>}, {pipeline_mode = #tpu.pipeline_mode<synchronous>, transform_indices = @transform_2, window_bounds = array<i64: 1, 256>}, {pipeline_mode = #tpu.pipeline_mode<synchronous>, transform_indices = @transform_3, window_bounds = array<i64: 128, 128>}, {pipeline_mode = #tpu.pipeline_mode<synchronous>, transform_indices = @transform_4, window_bounds = array<i64: 1, 128>}, {transform_indices = @transform_5, window_bounds = array<i64: 256, 128>}]} {
    %c0 = arith.constant 0 : index
    %c0_0 = arith.constant 0 : index
    %0 = vector.load %arg1[%c0, %c0_0] : memref<256x128xf32, #tpu.memory_space<vmem>>, vector<256x128xf32>
    %1 = arith.truncf %0 : vector<256x128xf32> to vector<256x128xbf16>
    %c0_1 = arith.constant 0 : index
    %c0_2 = arith.constant 0 : index
    %2 = vector.load %arg2[%c0_1, %c0_2] : memref<128x256xbf16, #tpu.memory_space<vmem>>, vector<128x256xbf16>
    %cst = arith.constant dense<0.000000e+00> : vector<256x256xf32>
    %3 = tpu.matmul %1, %2, %cst {dimension_numbers = #tpu.dot_dimension_numbers<[1], [0], [0], [1], [0, 0, 1, 1], [], []>} : vector<256x128xbf16>, vector<128x256xbf16>, vector<256x256xf32> -> vector<256x256xf32>
    %c0_3 = arith.constant 0 : index
    %c0_4 = arith.constant 0 : index
    %4 = vector.load %arg3[%c0_3, %c0_4] : memref<1x256xf32, #tpu.memory_space<vmem>>, vector<1x256xf32>
    %5 = vector.broadcast %4 : vector<1x256xf32> to vector<256x256xf32>
    %6 = arith.addf %3, %5 : vector<256x256xf32>
    %7 = vector.extract_strided_slice %6 {offsets = [0, 0], sizes = [256, 128], strides = [1, 1]} : vector<256x256xf32> to vector<256x128xf32>
    %8 = vector.extract_strided_slice %6 {offsets = [0, 128], sizes = [256, 128], strides = [1, 1]} : vector<256x256xf32> to vector<256x128xf32>
    %cst_5 = arith.constant 0.000000e+00 : f32
    %9 = vector.broadcast %cst_5 : f32 to vector<256x128xf32>
    %10 = arith.maximumf %8, %9 : vector<256x128xf32>
    %11 = arith.truncf %10 : vector<256x128xf32> to vector<256x128xbf16>
    %c0_6 = arith.constant 0 : index
    %c0_7 = arith.constant 0 : index
    %12 = vector.load %arg4[%c0_6, %c0_7] : memref<128x128xbf16, #tpu.memory_space<vmem>>, vector<128x128xbf16>
    %cst_8 = arith.constant dense<0.000000e+00> : vector<256x128xf32>
    %13 = tpu.matmul %11, %12, %cst_8 {dimension_numbers = #tpu.dot_dimension_numbers<[1], [0], [0], [1], [0, 0, 1, 1], [], []>} : vector<256x128xbf16>, vector<128x128xbf16>, vector<256x128xf32> -> vector<256x128xf32>
    %c0_9 = arith.constant 0 : index
    %c0_10 = arith.constant 0 : index
    %14 = vector.load %arg5[%c0_9, %c0_10] : memref<1x128xf32, #tpu.memory_space<vmem>>, vector<1x128xf32>
    %15 = vector.broadcast %14 : vector<1x128xf32> to vector<256x128xf32>
    %16 = arith.addf %13, %15 : vector<256x128xf32>
    %17 = arith.negf %16 : vector<256x128xf32>
    %18 = math.exp %17 : vector<256x128xf32>
    %cst_11 = arith.constant 1.000000e+00 : f32
    %19 = vector.broadcast %cst_11 : f32 to vector<256x128xf32>
    %20 = arith.addf %19, %18 : vector<256x128xf32>
    %21 = arith.divf %19, %20 : vector<256x128xf32>
    %22 = arith.mulf %0, %21 : vector<256x128xf32>
    %23 = arith.addf %22, %7 : vector<256x128xf32>
    %c0_12 = arith.constant 0 : index
    %c0_13 = arith.constant 0 : index
    %24 = vector.load %arg6[%c0_12, %c0_13] : memref<256x128xf32, #tpu.memory_space<vmem>>, vector<256x128xf32>
    tpu.vector_store %arg6[%c0_12, %c0_13], %23 {strides = array<i32>} : memref<256x128xf32, #tpu.memory_space<vmem>>, vector<256x128xf32>,
    return
  }
  func.func @transform_0(%arg0: i32) -> (i32, i32) {
    %c0_i32 = arith.constant 0 : i32
    %c0_i32_0 = arith.constant 0 : i32
    return %arg0, %c0_i32 : i32, i32
  }
  func.func @transform_1(%arg0: i32) -> (i32, i32) {
    %c0_i32 = arith.constant 0 : i32
    %c0_i32_0 = arith.constant 0 : i32
    %c0_i32_1 = arith.constant 0 : i32
    return %c0_i32, %c0_i32_0 : i32, i32
  }
  func.func @transform_2(%arg0: i32) -> (i32, i32) {
    %c0_i32 = arith.constant 0 : i32
    %c0_i32_0 = arith.constant 0 : i32
    %c0_i32_1 = arith.constant 0 : i32
    return %c0_i32, %c0_i32_0 : i32, i32
  }
  func.func @transform_3(%arg0: i32) -> (i32, i32) {
    %c0_i32 = arith.constant 0 : i32
    %c0_i32_0 = arith.constant 0 : i32
    %c0_i32_1 = arith.constant 0 : i32
    return %c0_i32, %c0_i32_0 : i32, i32
  }
  func.func @transform_4(%arg0: i32) -> (i32, i32) {
    %c0_i32 = arith.constant 0 : i32
    %c0_i32_0 = arith.constant 0 : i32
    %c0_i32_1 = arith.constant 0 : i32
    return %c0_i32, %c0_i32_0 : i32, i32
  }
  func.func @transform_5(%arg0: i32) -> (i32, i32) {
    %c0_i32 = arith.constant 0 : i32
    %c0_i32_0 = arith.constant 0 : i32
    return %arg0, %c0_i32 : i32, i32
  }
}

</mosaic_0001>

<llo_original>
// kernel: tpu_custom_call.1
$region0: #{tpu_custom_call.1}
  #allocation0 [shape = 'u32[]', space=smem, size = 0x4, offset = 0x4, fixed_abs, tag = 'smem constant byte address 0x4 - core index']
  #allocation1 [shape = 'u32[72,128]{1,0:T(1,128)}', space=vmem, size = 0x9000, scoped, tag = 'internal scratch']
  %s0 = inlined_call_operand.hbm [shape: f32[256,128], index: 0, kind: input, shape index: {}, may-alias: {0,5}]
  %s1 = inlined_call_operand.vmem [shape: bf16[128,256], index: 1, kind: input, shape index: {}]
  %s2 = inlined_call_operand.vmem [shape: f32[1,256], index: 2, kind: input, shape index: {}]
  %s3 = inlined_call_operand.vmem [shape: bf16[128,128], index: 3, kind: input, shape index: {}]
  %s4 = inlined_call_operand.vmem [shape: f32[1,128], index: 4, kind: input, shape index: {}]
  %s5 = inlined_call_operand.hbm [shape: f32[256,128], index: 5, kind: output, shape index: {}, may-alias: {0,5}]
  %s6 = sld [smem:[#allocation0]]
  $region34: #{tpu_custom_call.1} parent=0
    _
  %s8 = ssub.s32 1, %s6
  %s9 = scalar_select 0, %s8, %s6
  $region1: #{tpu_custom_call.1} parent=0
    #allocation2 [shape = 'u8[131072]{0}', space=vmem, size = 0x20000, scoped, tag = 'input window, operand 0, single buffered']
    #allocation3 [shape = 's32[1]{0}', space=sflag, size = 0x4, scoped, tag = 'scoped memory for tpu_custom_call.1']
    #allocation4 [shape = 's32[1]{0}', space=sflag, size = 0x4, scoped, tag = 'scoped memory for tpu_custom_call.1']
    #allocation5 [shape = 'u8[131072]{0}', space=vmem, size = 0x20000, scoped, tag = 'output window, operand 0, single buffered']
    %10 = vsyncpa [#allocation3], 0
    %11 = vsyncpa [#allocation4], 0
    // Predicated region
    $region2: #{tpu_custom_call.1} parent=1 // pred_check
      _
    $region3: #{tpu_custom_call.1} parent=1 // pred_check_branch
      %13 = sbr.rel (0) target = $region5
    $region4: #{tpu_custom_call.1} parent=1 // pred_region
      %15 = vsyncadd [#allocation3], 0
      %s16 = sshll.u32 %s0, 4
      %s17 = int_to_ptr.hbm [resolvable:$true] %s16
      %s18 = sshll.u32 [#allocation2], 4
      %s19 = int_to_ptr.vmem [resolvable:$true] %s18
      %24 = dma.hbm_to_vmem [thread:$0]  %s17, 4096, %s19, [#allocation3], 128, 128, 8
    $region5: #{tpu_custom_call.1} parent=1 // pred_fallthru
      _
    // Predicated region
    $region6: #{tpu_custom_call.1} parent=1 // pred_check
      _
    $region7: #{tpu_custom_call.1} parent=1 // pred_check_branch
      %26 = sbr.rel (0) target = $region9
    $region8: #{tpu_custom_call.1} parent=1 // pred_region
      _
    $region9: #{tpu_custom_call.1} parent=1 // pred_fallthru
      _
    // Predicated region
    $region10: #{tpu_custom_call.1} parent=1 // pred_check
      _
    $region11: #{tpu_custom_call.1} parent=1 // pred_check_branch
      %28 = sbr.rel (0) target = $region13
    $region12: #{tpu_custom_call.1} parent=1 // pred_region
      _
    $region13: #{tpu_custom_call.1} parent=1 // pred_fallthru
      _
    // Predicated region
    $region14: #{tpu_custom_call.1} parent=1 // pred_check
      _
    $region15: #{tpu_custom_call.1} parent=1 // pred_check_branch
      %30 = sbr.rel (0) target = $region17
    $region16: #{tpu_custom_call.1} parent=1 // pred_region
      _
    $region17: #{tpu_custom_call.1} parent=1 // pred_fallthru
      _
    // Predicated region
    $region18: #{tpu_custom_call.1} parent=1 // pred_check
      _
    $region19: #{tpu_custom_call.1} parent=1 // pred_check_branch
      %32 = sbr.rel (0) target = $region21
    $region20: #{tpu_custom_call.1} parent=1 // pred_region
      _
    $region21: #{tpu_custom_call.1} parent=1 // pred_fallthru
      _
    // Predicated region
    $region22: #{tpu_custom_call.1} parent=1 // pred_check
      _
    $region23: #{tpu_custom_call.1} parent=1 // pred_check_branch
      %34 = sbr.rel (0) target = $region25
    $region24: #{tpu_custom_call.1} parent=1 // pred_region
      %36 = dma.done [#allocation3], 4096
    $region25: #{tpu_custom_call.1} parent=1 // pred_fallthru
      _
    %v37 = vld [vmem:[#allocation2] sm:$0xff]
    %v38 = vld [vmem:[#allocation2 + $0x8] sm:$0xff]
    %v39 = vld [vmem:[#allocation2 + $0x10] sm:$0xff]
    %v40 = vld [vmem:[#allocation2 + $0x18] sm:$0xff]
    %v41 = vld [vmem:[#allocation2 + $0x20] sm:$0xff]
    %v42 = vld [vmem:[#allocation2 + $0x28] sm:$0xff]
    %v43 = vld [vmem:[#allocation2 + $0x30] sm:$0xff]
    %v44 = vld [vmem:[#allocation2 + $0x38] sm:$0xff]
    %v45 = vld [vmem:[#allocation2 + $0x40] sm:$0xff]
    %v46 = vld [vmem:[#allocation2 + $0x48] sm:$0xff]
    %v47 = vld [vmem:[#allocation2 + $0x50] sm:$0xff]
    %v48 = vld [vmem:[#allocation2 + $0x58] sm:$0xff]
    %v49 = vld [vmem:[#allocation2 + $0x60] sm:$0xff]
    %v50 = vld [vmem:[#allocation2 + $0x68] sm:$0xff]
    %v51 = vld [vmem:[#allocation2 + $0x70] sm:$0xff]
    %v52 = vld [vmem:[#allocation2 + $0x78] sm:$0xff]
    %v53 = vld [vmem:[#allocation2 + $0x80] sm:$0xff]
    %v54 = vld [vmem:[#allocation2 + $0x88] sm:$0xff]
    %v55 = vld [vmem:[#allocation2 + $0x90] sm:$0xff]
    %v56 = vld [vmem:[#allocation2 + $0x98] sm:$0xff]
    %v57 = vld [vmem:[#allocation2 + $0xa0] sm:$0xff]
    %v58 = vld [vmem:[#allocation2 + $0xa8] sm:$0xff]
    %v59 = vld [vmem:[#allocation2 + $0xb0] sm:$0xff]
    %v60 = vld [vmem:[#allocation2 + $0xb8] sm:$0xff]
    %v61 = vld [vmem:[#allocation2 + $0xc0] sm:$0xff]
    %v62 = vld [vmem:[#allocation2 + $0xc8] sm:$0xff]
    %v63 = vld [vmem:[#allocation2 + $0xd0] sm:$0xff]
    %v64 = vld [vmem:[#allocation2 + $0xd8] sm:$0xff]
    %v65 = vld [vmem:[#allocation2 + $0xe0] sm:$0xff]
    %v66 = vld [vmem:[#allocation2 + $0xe8] sm:$0xff]
    %v67 = vld [vmem:[#allocation2 + $0xf0] sm:$0xff]
    %v68 = vld [vmem:[#allocation2 + $0xf8] sm:$0xff]
    %v69 = vpack.c.bf16 %v38, %v37
    %v70 = vpack.c.bf16 %v40, %v39
    %v71 = vpack.c.bf16 %v42, %v41
    %v72 = vpack.c.bf16 %v44, %v43
    %v73 = vpack.c.bf16 %v46, %v45
    %v74 = vpack.c.bf16 %v48, %v47
    %v75 = vpack.c.bf16 %v50, %v49
    %v76 = vpack.c.bf16 %v52, %v51
    %v77 = vpack.c.bf16 %v54, %v53
    %v78 = vpack.c.bf16 %v56, %v55
    %v79 = vpack.c.bf16 %v58, %v57
    %v80 = vpack.c.bf16 %v60, %v59
    %v81 = vpack.c.bf16 %v62, %v61
    %v82 = vpack.c.bf16 %v64, %v63
    %v83 = vpack.c.bf16 %v66, %v65
    %v84 = vpack.c.bf16 %v68, %v67
    %v85 = vld [vmem:[%s1] sm:$0xff]
    %v86 = vld [vmem:[%s1 + $0x8] sm:$0xff]
    %v87 = vld [vmem:[%s1 + $0x10] sm:$0xff]
    %v88 = vld [vmem:[%s1 + $0x18] sm:$0xff]
    %v89 = vld [vmem:[%s1 + $0x20] sm:$0xff]
    %v90 = vld [vmem:[%s1 + $0x28] sm:$0xff]
    %v91 = vld [vmem:[%s1 + $0x30] sm:$0xff]
    %v92 = vld [vmem:[%s1 + $0x38] sm:$0xff]
    %v93 = vld [vmem:[%s1 + $0x40] sm:$0xff]
    %v94 = vld [vmem:[%s1 + $0x48] sm:$0xff]
    %v95 = vld [vmem:[%s1 + $0x50] sm:$0xff]
    %v96 = vld [vmem:[%s1 + $0x58] sm:$0xff]
    %v97 = vld [vmem:[%s1 + $0x60] sm:$0xff]
    %v98 = vld [vmem:[%s1 + $0x68] sm:$0xff]
    %v99 = vld [vmem:[%s1 + $0x70] sm:$0xff]
    %v100 = vld [vmem:[%s1 + $0x78] sm:$0xff]
    %v101 = vld [vmem:[%s2] sm:$0x3]
    %v103 = vperm.slane %v101, 0
    %v104 = vperm.slane %v101, 1
    %v123 = vunpack.c.l.b16 %v85
    %v124 = vunpack.c.h.b16 %v85
    %v125 = vunpack.c.l.b16 %v86
    %v126 = vunpack.c.h.b16 %v86
    %v127 = vunpack.c.l.b16 %v87
    %v128 = vunpack.c.h.b16 %v87
    %v129 = vunpack.c.l.b16 %v88
    %v130 = vunpack.c.h.b16 %v88
    %v131 = vunpack.c.l.b16 %v89
    %v132 = vunpack.c.h.b16 %v89
    %v133 = vunpack.c.l.b16 %v90
    %v134 = vunpack.c.h.b16 %v90
    %v135 = vunpack.c.l.b16 %v91
    %v136 = vunpack.c.h.b16 %v91
    %v137 = vunpack.c.l.b16 %v92
    %v138 = vunpack.c.h.b16 %v92
    %v139 = vunpack.c.l.b16 %v93
    %v140 = vunpack.c.h.b16 %v93
    %v141 = vunpack.c.l.b16 %v94
    %v142 = vunpack.c.h.b16 %v94
    %v143 = vunpack.c.l.b16 %v95
    %v144 = vunpack.c.h.b16 %v95
    %v145 = vunpack.c.l.b16 %v96
    %v146 = vunpack.c.h.b16 %v96
    %v147 = vunpack.c.l.b16 %v97
    %v148 = vunpack.c.h.b16 %v97
    %v149 = vunpack.c.l.b16 %v98
    %v150 = vunpack.c.h.b16 %v98
    %v151 = vunpack.c.l.b16 %v99
    %v152 = vunpack.c.h.b16 %v99
    %v153 = vunpack.c.l.b16 %v100
    %v154 = vunpack.c.h.b16 %v100
    %v155 = vpack.c.b16 %v125, %v123
    %v156 = vpack.c.b16 %v126, %v124
    %v157 = vpack.c.b16 %v129, %v127
    %v158 = vpack.c.b16 %v130, %v128
    %v159 = vpack.c.b16 %v133, %v131
    %v160 = vpack.c.b16 %v134, %v132
    %v161 = vpack.c.b16 %v137, %v135
    %v162 = vpack.c.b16 %v138, %v136
    %v163 = vpack.c.b16 %v141, %v139
    %v164 = vpack.c.b16 %v142, %v140
    %v165 = vpack.c.b16 %v145, %v143
    %v166 = vpack.c.b16 %v146, %v144
    %v167 = vpack.c.b16 %v149, %v147
    %v168 = vpack.c.b16 %v150, %v148
    %v169 = vpack.c.b16 %v153, %v151
    %v170 = vpack.c.b16 %v154, %v152
    %187 = vmatpush.bf16.msra.mxu0 %v169
    %188 = vmatpush.bf16.msra.mxu0 %v167
    %189 = vmatpush.bf16.msra.mxu0 %v165
    %190 = vmatpush.bf16.msra.mxu0 %v163
    %191 = vmatpush.bf16.msra.mxu0 %v161
    %192 = vmatpush.bf16.msra.mxu0 %v159
    %193 = vmatpush.bf16.msra.mxu0 %v157
    %194 = vmatpush.bf16.msra.mxu0 %v155
    %195 = vmatmul.bf16.gmra.mxu0 %v69
    %v196 = vpop.f32.mrf.mxu0
    %v197 = vadd.f32 %v103, %v196
    %v198 = vpop.f32.mrf.mxu0
    %v199 = vadd.f32 %v103, %v198
    %200 = vmatmul.bf16.gmra.mxu0 %v70
    %v201 = vpop.f32.mrf.mxu0
    %v202 = vadd.f32 %v103, %v201
    %v203 = vpop.f32.mrf.mxu0
    %v204 = vadd.f32 %v103, %v203
    %205 = vmatmul.bf16.gmra.mxu0 %v71
    %v206 = vpop.f32.mrf.mxu0
    %v207 = vadd.f32 %v103, %v206
    %v208 = vpop.f32.mrf.mxu0
    %v209 = vadd.f32 %v103, %v208
    %210 = vmatmul.bf16.gmra.mxu0 %v72
    %v211 = vpop.f32.mrf.mxu0
    %v212 = vadd.f32 %v103, %v211
    %v213 = vpop.f32.mrf.mxu0
    %v214 = vadd.f32 %v103, %v213
    %215 = vmatmul.bf16.gmra.mxu0 %v73
    %v216 = vpop.f32.mrf.mxu0
    %v217 = vadd.f32 %v103, %v216
    %v218 = vpop.f32.mrf.mxu0
    %v219 = vadd.f32 %v103, %v218
    %220 = vmatmul.bf16.gmra.mxu0 %v74
    %v221 = vpop.f32.mrf.mxu0
    %v222 = vadd.f32 %v103, %v221
    %v223 = vpop.f32.mrf.mxu0
    %v224 = vadd.f32 %v103, %v223
    %225 = vmatmul.bf16.gmra.mxu0 %v75
    %v226 = vpop.f32.mrf.mxu0
    %v227 = vadd.f32 %v103, %v226
    %v228 = vpop.f32.mrf.mxu0
    %v229 = vadd.f32 %v103, %v228
    %230 = vmatmul.bf16.gmra.mxu0 %v76
    %v231 = vpop.f32.mrf.mxu0
    %v232 = vadd.f32 %v103, %v231
    %v233 = vpop.f32.mrf.mxu0
    %v234 = vadd.f32 %v103, %v233
    %235 = vmatmul.bf16.gmra.mxu0 %v77
    %v236 = vpop.f32.mrf.mxu0
    %v237 = vadd.f32 %v103, %v236
    %v238 = vpop.f32.mrf.mxu0
    %v239 = vadd.f32 %v103, %v238
    %240 = vmatmul.bf16.gmra.mxu0 %v78
    %v241 = vpop.f32.mrf.mxu0
    %v242 = vadd.f32 %v103, %v241
    %v243 = vpop.f32.mrf.mxu0
    %v244 = vadd.f32 %v103, %v243
    %245 = vmatmul.bf16.gmra.mxu0 %v79
    %v246 = vpop.f32.mrf.mxu0
    %v247 = vadd.f32 %v103, %v246
    %v248 = vpop.f32.mrf.mxu0
    %v249 = vadd.f32 %v103, %v248
    %250 = vmatmul.bf16.gmra.mxu0 %v80
    %v251 = vpop.f32.mrf.mxu0
    %v252 = vadd.f32 %v103, %v251
    %v253 = vpop.f32.mrf.mxu0
    %v254 = vadd.f32 %v103, %v253
    %255 = vmatmul.bf16.gmra.mxu0 %v81
    %v256 = vpop.f32.mrf.mxu0
    %v257 = vadd.f32 %v103, %v256
    %v258 = vpop.f32.mrf.mxu0
    %v259 = vadd.f32 %v103, %v258
    %260 = vmatmul.bf16.gmra.mxu0 %v82
    %v261 = vpop.f32.mrf.mxu0
    %v262 = vadd.f32 %v103, %v261
    %v263 = vpop.f32.mrf.mxu0
    %v264 = vadd.f32 %v103, %v263
    %265 = vmatmul.bf16.gmra.mxu0 %v83
    %v266 = vpop.f32.mrf.mxu0
    %v267 = vadd.f32 %v103, %v266
    %v268 = vpop.f32.mrf.mxu0
    %v269 = vadd.f32 %v103, %v268
    %270 = vmatmul.bf16.gmra.mxu0 %v84
    %v271 = vpop.f32.mrf.mxu0
    %v272 = vadd.f32 %v103, %v271
    %v273 = vpop.f32.mrf.mxu0
    %v274 = vadd.f32 %v103, %v273
    %275 = vdwg.mxu0
    %276 = vmatpush.bf16.msra.mxu0 %v170
    %277 = vmatpush.bf16.msra.mxu0 %v168
    %278 = vmatpush.bf16.msra.mxu0 %v166
    %279 = vmatpush.bf16.msra.mxu0 %v164
    %280 = vmatpush.bf16.msra.mxu0 %v162
    %281 = vmatpush.bf16.msra.mxu0 %v160
    %282 = vmatpush.bf16.msra.mxu0 %v158
    %283 = vmatpush.bf16.msra.mxu0 %v156
    %284 = vmatmul.bf16.gmra.mxu0 %v69
    %v285 = vpop.f32.mrf.mxu0
    %v286 = vadd.f32 %v104, %v285
    %v287 = vpop.f32.mrf.mxu0
    %v288 = vadd.f32 %v104, %v287
    %289 = vmatmul.bf16.gmra.mxu0 %v70
    %v290 = vpop.f32.mrf.mxu0
    %v291 = vadd.f32 %v104, %v290
    %v292 = vpop.f32.mrf.mxu0
    %v293 = vadd.f32 %v104, %v292
    %294 = vmatmul.bf16.gmra.mxu0 %v71
    %v295 = vpop.f32.mrf.mxu0
    %v296 = vadd.f32 %v104, %v295
    %v297 = vpop.f32.mrf.mxu0
    %v298 = vadd.f32 %v104, %v297
    %299 = vmatmul.bf16.gmra.mxu0 %v72
    %v300 = vpop.f32.mrf.mxu0
    %v301 = vadd.f32 %v104, %v300
    %v302 = vpop.f32.mrf.mxu0
    %v303 = vadd.f32 %v104, %v302
    %304 = vmatmul.bf16.gmra.mxu0 %v73
    %v305 = vpop.f32.mrf.mxu0
    %v306 = vadd.f32 %v104, %v305
    %v307 = vpop.f32.mrf.mxu0
    %v308 = vadd.f32 %v104, %v307
    %309 = vmatmul.bf16.gmra.mxu0 %v74
    %v310 = vpop.f32.mrf.mxu0
    %v311 = vadd.f32 %v104, %v310
    %v312 = vpop.f32.mrf.mxu0
    %v313 = vadd.f32 %v104, %v312
    %314 = vmatmul.bf16.gmra.mxu0 %v75
    %v315 = vpop.f32.mrf.mxu0
    %v316 = vadd.f32 %v104, %v315
    %v317 = vpop.f32.mrf.mxu0
    %v318 = vadd.f32 %v104, %v317
    %319 = vmatmul.bf16.gmra.mxu0 %v76
    %v320 = vpop.f32.mrf.mxu0
    %v321 = vadd.f32 %v104, %v320
    %v322 = vpop.f32.mrf.mxu0
    %v323 = vadd.f32 %v104, %v322
    %324 = vmatmul.bf16.gmra.mxu0 %v77
    %v325 = vpop.f32.mrf.mxu0
    %v326 = vadd.f32 %v104, %v325
    %v327 = vpop.f32.mrf.mxu0
    %v328 = vadd.f32 %v104, %v327
    %329 = vmatmul.bf16.gmra.mxu0 %v78
    %v330 = vpop.f32.mrf.mxu0
    %v331 = vadd.f32 %v104, %v330
    %v332 = vpop.f32.mrf.mxu0
    %v333 = vadd.f32 %v104, %v332
    %334 = vmatmul.bf16.gmra.mxu0 %v79
    %v335 = vpop.f32.mrf.mxu0
    %v336 = vadd.f32 %v104, %v335
    %v337 = vpop.f32.mrf.mxu0
    %v338 = vadd.f32 %v104, %v337
    %339 = vmatmul.bf16.gmra.mxu0 %v80
    %v340 = vpop.f32.mrf.mxu0
    %v341 = vadd.f32 %v104, %v340
    %v342 = vpop.f32.mrf.mxu0
    %v343 = vadd.f32 %v104, %v342
    %344 = vmatmul.bf16.gmra.mxu0 %v81
    %v345 = vpop.f32.mrf.mxu0
    %v346 = vadd.f32 %v104, %v345
    %v347 = vpop.f32.mrf.mxu0
    %v348 = vadd.f32 %v104, %v347
    %349 = vmatmul.bf16.gmra.mxu0 %v82
    %v350 = vpop.f32.mrf.mxu0
    %v351 = vadd.f32 %v104, %v350
    %v352 = vpop.f32.mrf.mxu0
    %v353 = vadd.f32 %v104, %v352
    %354 = vmatmul.bf16.gmra.mxu0 %v83
    %v355 = vpop.f32.mrf.mxu0
    %v356 = vadd.f32 %v104, %v355
    %v357 = vpop.f32.mrf.mxu0
    %v358 = vadd.f32 %v104, %v357
    %359 = vmatmul.bf16.gmra.mxu0 %v84
    %v360 = vpop.f32.mrf.mxu0
    %v361 = vadd.f32 %v104, %v360
    %v362 = vpop.f32.mrf.mxu0
    %v363 = vadd.f32 %v104, %v362
    %364 = vdwg.mxu0
    %v365 = vmax.f32 %v286, 0.0
    %v366 = vmax.f32 %v288, 0.0
    %v367 = vmax.f32 %v291, 0.0
    %v368 = vmax.f32 %v293, 0.0
    %v369 = vmax.f32 %v296, 0.0
    %v370 = vmax.f32 %v298, 0.0
    %v371 = vmax.f32 %v301, 0.0
    %v372 = vmax.f32 %v303, 0.0
    %v373 = vmax.f32 %v306, 0.0
    %v374 = vmax.f32 %v308, 0.0
    %v375 = vmax.f32 %v311, 0.0
    %v376 = vmax.f32 %v313, 0.0
    %v377 = vmax.f32 %v316, 0.0
    %v378 = vmax.f32 %v318, 0.0
    %v379 = vmax.f32 %v321, 0.0
    %v380 = vmax.f32 %v323, 0.0
    %v381 = vmax.f32 %v326, 0.0
    %v382 = vmax.f32 %v328, 0.0
    %v383 = vmax.f32 %v331, 0.0
    %v384 = vmax.f32 %v333, 0.0
    %v385 = vmax.f32 %v336, 0.0
    %v386 = vmax.f32 %v338, 0.0
    %v387 = vmax.f32 %v341, 0.0
    %v388 = vmax.f32 %v343, 0.0
    %v389 = vmax.f32 %v346, 0.0
    %v390 = vmax.f32 %v348, 0.0
    %v391 = vmax.f32 %v351, 0.0
    %v392 = vmax.f32 %v353, 0.0
    %v393 = vmax.f32 %v356, 0.0
    %v394 = vmax.f32 %v358, 0.0
    %v395 = vmax.f32 %v361, 0.0
    %v396 = vmax.f32 %v363, 0.0
    %v397 = vpack.c.bf16 %v366, %v365
    %v398 = vpack.c.bf16 %v368, %v367
    %v399 = vpack.c.bf16 %v370, %v369
    %v400 = vpack.c.bf16 %v372, %v371
    %v401 = vpack.c.bf16 %v374, %v373
    %v402 = vpack.c.bf16 %v376, %v375
    %v403 = vpack.c.bf16 %v378, %v377
    %v404 = vpack.c.bf16 %v380, %v379
    %v405 = vpack.c.bf16 %v382, %v381
    %v406 = vpack.c.bf16 %v384, %v383
    %v407 = vpack.c.bf16 %v386, %v385
    %v408 = vpack.c.bf16 %v388, %v387
    %v409 = vpack.c.bf16 %v390, %v389
    %v410 = vpack.c.bf16 %v392, %v391
    %v411 = vpack.c.bf16 %v394, %v393
    %v412 = vpack.c.bf16 %v396, %v395
    %v413 = vld [vmem:[%s3] sm:$0xf]
    %v414 = vld [vmem:[%s3 + $0x4] sm:$0xf]
    %v415 = vld [vmem:[%s3 + $0x8] sm:$0xf]
    %v416 = vld [vmem:[%s3 + $0xc] sm:$0xf]
    %v417 = vld [vmem:[%s3 + $0x10] sm:$0xf]
    %v418 = vld [vmem:[%s3 + $0x14] sm:$0xf]
    %v419 = vld [vmem:[%s3 + $0x18] sm:$0xf]
    %v420 = vld [vmem:[%s3 + $0x1c] sm:$0xf]
    %v421 = vld [vmem:[%s3 + $0x20] sm:$0xf]
    %v422 = vld [vmem:[%s3 + $0x24] sm:$0xf]
    %v423 = vld [vmem:[%s3 + $0x28] sm:$0xf]
    %v424 = vld [vmem:[%s3 + $0x2c] sm:$0xf]
    %v425 = vld [vmem:[%s3 + $0x30] sm:$0xf]
    %v426 = vld [vmem:[%s3 + $0x34] sm:$0xf]
    %v427 = vld [vmem:[%s3 + $0x38] sm:$0xf]
    %v428 = vld [vmem:[%s3 + $0x3c] sm:$0xf]
    %v429 = vld [vmem:[%s4] sm:$0x1]
    %v431 = vperm.slane %v429, 0
    %v449 = vunpack.c.l.b16 %v413
    %v450 = vunpack.c.l.b16 %v414
    %v451 = vunpack.c.l.b16 %v415
    %v452 = vunpack.c.l.b16 %v416
    %v453 = vunpack.c.l.b16 %v417
    %v454 = vunpack.c.l.b16 %v418
    %v455 = vunpack.c.l.b16 %v419
    %v456 = vunpack.c.l.b16 %v420
    %v457 = vunpack.c.l.b16 %v421
    %v458 = vunpack.c.l.b16 %v422
    %v459 = vunpack.c.l.b16 %v423
    %v460 = vunpack.c.l.b16 %v424
    %v461 = vunpack.c.l.b16 %v425
    %v462 = vunpack.c.l.b16 %v426
    %v463 = vunpack.c.l.b16 %v427
    %v464 = vunpack.c.l.b16 %v428
    %v465 = vpack.c.b16 %v450, %v449
    %v466 = vpack.c.b16 %v452, %v451
    %v467 = vpack.c.b16 %v454, %v453
    %v468 = vpack.c.b16 %v456, %v455
    %v469 = vpack.c.b16 %v458, %v457
    %v470 = vpack.c.b16 %v460, %v459
    %v471 = vpack.c.b16 %v462, %v461
    %v472 = vpack.c.b16 %v464, %v463
    %481 = vmatpush.bf16.msra.mxu0 %v472
    %482 = vmatpush.bf16.msra.mxu0 %v471
    %483 = vmatpush.bf16.msra.mxu0 %v470
    %484 = vmatpush.bf16.msra.mxu0 %v469
    %485 = vmatpush.bf16.msra.mxu0 %v468
    %486 = vmatpush.bf16.msra.mxu0 %v467
    %487 = vmatpush.bf16.msra.mxu0 %v466
    %488 = vmatpush.bf16.msra.mxu0 %v465
    %489 = vmatmul.bf16.gmra.mxu0 %v397
    %v490 = vpop.f32.mrf.mxu0
    %v491 = vadd.f32 %v431, %v490
    %v492 = vpop.f32.mrf.mxu0
    %v493 = vadd.f32 %v431, %v492
    %494 = vmatmul.bf16.gmra.mxu0 %v398
    %v495 = vpop.f32.mrf.mxu0
    %v496 = vadd.f32 %v431, %v495
    %v497 = vpop.f32.mrf.mxu0
    %v498 = vadd.f32 %v431, %v497
    %499 = vmatmul.bf16.gmra.mxu0 %v399
    %v500 = vpop.f32.mrf.mxu0
    %v501 = vadd.f32 %v431, %v500
    %v502 = vpop.f32.mrf.mxu0
    %v503 = vadd.f32 %v431, %v502
    %504 = vmatmul.bf16.gmra.mxu0 %v400
    %v505 = vpop.f32.mrf.mxu0
    %v506 = vadd.f32 %v431, %v505
    %v507 = vpop.f32.mrf.mxu0
    %v508 = vadd.f32 %v431, %v507
    %509 = vmatmul.bf16.gmra.mxu0 %v401
    %v510 = vpop.f32.mrf.mxu0
    %v511 = vadd.f32 %v431, %v510
    %v512 = vpop.f32.mrf.mxu0
    %v513 = vadd.f32 %v431, %v512
    %514 = vmatmul.bf16.gmra.mxu0 %v402
    %v515 = vpop.f32.mrf.mxu0
    %v516 = vadd.f32 %v431, %v515
    %v517 = vpop.f32.mrf.mxu0
    %v518 = vadd.f32 %v431, %v517
    %519 = vmatmul.bf16.gmra.mxu0 %v403
    %v520 = vpop.f32.mrf.mxu0
    %v521 = vadd.f32 %v431, %v520
    %v522 = vpop.f32.mrf.mxu0
    %v523 = vadd.f32 %v431, %v522
    %524 = vmatmul.bf16.gmra.mxu0 %v404
    %v525 = vpop.f32.mrf.mxu0
    %v526 = vadd.f32 %v431, %v525
    %v527 = vpop.f32.mrf.mxu0
    %v528 = vadd.f32 %v431, %v527
    %529 = vmatmul.bf16.gmra.mxu0 %v405
    %v530 = vpop.f32.mrf.mxu0
    %v531 = vadd.f32 %v431, %v530
    %v532 = vpop.f32.mrf.mxu0
    %v533 = vadd.f32 %v431, %v532
    %534 = vmatmul.bf16.gmra.mxu0 %v406
    %v535 = vpop.f32.mrf.mxu0
    %v536 = vadd.f32 %v431, %v535
    %v537 = vpop.f32.mrf.mxu0
    %v538 = vadd.f32 %v431, %v537
    %539 = vmatmul.bf16.gmra.mxu0 %v407
    %v540 = vpop.f32.mrf.mxu0
    %v541 = vadd.f32 %v431, %v540
    %v542 = vpop.f32.mrf.mxu0
    %v543 = vadd.f32 %v431, %v542
    %544 = vmatmul.bf16.gmra.mxu0 %v408
    %v545 = vpop.f32.mrf.mxu0
    %v546 = vadd.f32 %v431, %v545
    %v547 = vpop.f32.mrf.mxu0
    %v548 = vadd.f32 %v431, %v547
    %549 = vmatmul.bf16.gmra.mxu0 %v409
    %v550 = vpop.f32.mrf.mxu0
    %v551 = vadd.f32 %v431, %v550
    %v552 = vpop.f32.mrf.mxu0
    %v553 = vadd.f32 %v431, %v552
    %554 = vmatmul.bf16.gmra.mxu0 %v410
    %v555 = vpop.f32.mrf.mxu0
    %v556 = vadd.f32 %v431, %v555
    %v557 = vpop.f32.mrf.mxu0
    %v558 = vadd.f32 %v431, %v557
    %559 = vmatmul.bf16.gmra.mxu0 %v411
    %v560 = vpop.f32.mrf.mxu0
    %v561 = vadd.f32 %v431, %v560
    %v562 = vpop.f32.mrf.mxu0
    %v563 = vadd.f32 %v431, %v562
    %564 = vmatmul.bf16.gmra.mxu0 %v412
    %v565 = vpop.f32.mrf.mxu0
    %v566 = vadd.f32 %v431, %v565
    %v567 = vpop.f32.mrf.mxu0
    %v568 = vadd.f32 %v431, %v567
    %569 = vdwg.mxu0
    %v570 = vxor.u32 %v491, 2147483648
    %v571 = vxor.u32 %v493, 2147483648
    %v572 = vxor.u32 %v496, 2147483648
    %v573 = vxor.u32 %v498, 2147483648
    %v574 = vxor.u32 %v501, 2147483648
    %v575 = vxor.u32 %v503, 2147483648
    %v576 = vxor.u32 %v506, 2147483648
    %v577 = vxor.u32 %v508, 2147483648
    %v578 = vxor.u32 %v511, 2147483648
    %v579 = vxor.u32 %v513, 2147483648
    %v580 = vxor.u32 %v516, 2147483648
    %v581 = vxor.u32 %v518, 2147483648
    %v582 = vxor.u32 %v521, 2147483648
    %v583 = vxor.u32 %v523, 2147483648
    %v584 = vxor.u32 %v526, 2147483648
    %v585 = vxor.u32 %v528, 2147483648
    %v586 = vxor.u32 %v531, 2147483648
    %v587 = vxor.u32 %v533, 2147483648
    %v588 = vxor.u32 %v536, 2147483648
    %v589 = vxor.u32 %v538, 2147483648
    %v590 = vxor.u32 %v541, 2147483648
    %v591 = vxor.u32 %v543, 2147483648
    %v592 = vxor.u32 %v546, 2147483648
    %v593 = vxor.u32 %v548, 2147483648
    %v594 = vxor.u32 %v551, 2147483648
    %v595 = vxor.u32 %v553, 2147483648
    %v596 = vxor.u32 %v556, 2147483648
    %v597 = vxor.u32 %v558, 2147483648
    %v598 = vxor.u32 %v561, 2147483648
    %v599 = vxor.u32 %v563, 2147483648
    %v600 = vxor.u32 %v566, 2147483648
    %v601 = vxor.u32 %v568, 2147483648
    %v602 = vmul.f32 %v570, 1.442695
    %v603 = vpow.pop %v602
    %v604 = vmul.f32 %v571, 1.442695
    %v605 = vpow.pop %v604
    %v606 = vmul.f32 %v572, 1.442695
    %v607 = vpow.pop %v606
    %v608 = vmul.f32 %v573, 1.442695
    %v609 = vpow.pop %v608
    %v610 = vmul.f32 %v574, 1.442695
    %v611 = vpow.pop %v610
    %v612 = vmul.f32 %v575, 1.442695
    %v613 = vpow.pop %v612
    %v614 = vmul.f32 %v576, 1.442695
    %v615 = vpow.pop %v614
    %v616 = vmul.f32 %v577, 1.442695
    %v617 = vpow.pop %v616
    %v618 = vmul.f32 %v578, 1.442695
    %v619 = vpow.pop %v618
    %v620 = vmul.f32 %v579, 1.442695
    %v621 = vpow.pop %v620
    %v622 = vmul.f32 %v580, 1.442695
    %v623 = vpow.pop %v622
    %v624 = vmul.f32 %v581, 1.442695
    %v625 = vpow.pop %v624
    %v626 = vmul.f32 %v582, 1.442695
    %v627 = vpow.pop %v626
    %v628 = vmul.f32 %v583, 1.442695
    %v629 = vpow.pop %v628
    %v630 = vmul.f32 %v584, 1.442695
    %v631 = vpow.pop %v630
    %v632 = vmul.f32 %v585, 1.442695
    %v633 = vpow.pop %v632
    %v634 = vmul.f32 %v586, 1.442695
    %v635 = vpow.pop %v634
    %v636 = vmul.f32 %v587, 1.442695
    %v637 = vpow.pop %v636
    %v638 = vmul.f32 %v588, 1.442695
    %v639 = vpow.pop %v638
    %v640 = vmul.f32 %v589, 1.442695
    %v641 = vpow.pop %v640
    %v642 = vmul.f32 %v590, 1.442695
    %v643 = vpow.pop %v642
    %v644 = vmul.f32 %v591, 1.442695
    %v645 = vpow.pop %v644
    %v646 = vmul.f32 %v592, 1.442695
    %v647 = vpow.pop %v646
    %v648 = vmul.f32 %v593, 1.442695
    %v649 = vpow.pop %v648
    %v650 = vmul.f32 %v594, 1.442695
    %v651 = vpow.pop %v650
    %v652 = vmul.f32 %v595, 1.442695
    %v653 = vpow.pop %v652
    %v654 = vmul.f32 %v596, 1.442695
    %v655 = vpow.pop %v654
    %v656 = vmul.f32 %v597, 1.442695
    %v657 = vpow.pop %v656
    %v658 = vmul.f32 %v598, 1.442695
    %v659 = vpow.pop %v658
    %v660 = vmul.f32 %v599, 1.442695
    %v661 = vpow.pop %v660
    %v662 = vmul.f32 %v600, 1.442695
    %v663 = vpow.pop %v662
    %v664 = vmul.f32 %v601, 1.442695
    %v665 = vpow.pop %v664
    %v666 = vadd.f32 %v603, 1.0
    %v667 = vadd.f32 %v605, 1.0
    %v668 = vadd.f32 %v607, 1.0
    %v669 = vadd.f32 %v609, 1.0
    %v670 = vadd.f32 %v611, 1.0
    %v671 = vadd.f32 %v613, 1.0
    %v672 = vadd.f32 %v615, 1.0
    %v673 = vadd.f32 %v617, 1.0
    %v674 = vadd.f32 %v619, 1.0
    %v675 = vadd.f32 %v621, 1.0
    %v676 = vadd.f32 %v623, 1.0
    %v677 = vadd.f32 %v625, 1.0
    %v678 = vadd.f32 %v627, 1.0
    %v679 = vadd.f32 %v629, 1.0
    %v680 = vadd.f32 %v631, 1.0
    %v681 = vadd.f32 %v633, 1.0
    %v682 = vadd.f32 %v635, 1.0
    %v683 = vadd.f32 %v637, 1.0
    %v684 = vadd.f32 %v639, 1.0
    %v685 = vadd.f32 %v641, 1.0
    %v686 = vadd.f32 %v643, 1.0
    %v687 = vadd.f32 %v645, 1.0
    %v688 = vadd.f32 %v647, 1.0
    %v689 = vadd.f32 %v649, 1.0
    %v690 = vadd.f32 %v651, 1.0
    %v691 = vadd.f32 %v653, 1.0
    %v692 = vadd.f32 %v655, 1.0
    %v693 = vadd.f32 %v657, 1.0
    %v694 = vadd.f32 %v659, 1.0
    %v695 = vadd.f32 %v661, 1.0
    %v696 = vadd.f32 %v663, 1.0
    %v697 = vadd.f32 %v665, 1.0
    %v698 = vrcp.pop %v666
    %v699 = vmul.f32 %v666, %v698
    %v700 = vsub.f32 1.0, %v699
    %v701 = vmul.f32 %v698, %v700
    %v702 = vadd.f32 %v698, %v701
    %vm703 = vweird.f32 %v666
    %vm704 = vweird.f32 %v698
    %vm705 = vmor %vm703, %vm704
    %v706 = vsel %vm705, %v698, %v702
    %v707 = vand.u32 2147483647, %v666
    %vm708 = vcmp.eq.f32.partialorder %v707, 8.507059e+37
    %v709 = vand.u32 %v666, 2147483648
    %v710 = vor.u32 1.1754944e-38, %v709
    %v711 = vsel %vm708, %v710, %v706
    %v712 = vmul.f32 1.0, %v711
    %v713 = vrcp.pop %v667
    %v714 = vmul.f32 %v667, %v713
    %v715 = vsub.f32 1.0, %v714
    %v716 = vmul.f32 %v713, %v715
    %v717 = vadd.f32 %v713, %v716
    %vm718 = vweird.f32 %v667
    %vm719 = vweird.f32 %v713
    %vm720 = vmor %vm718, %vm719
    %v721 = vsel %vm720, %v713, %v717
    %v722 = vand.u32 2147483647, %v667
    %vm723 = vcmp.eq.f32.partialorder %v722, 8.507059e+37
    %v724 = vand.u32 %v667, 2147483648
    %v725 = vor.u32 1.1754944e-38, %v724
    %v726 = vsel %vm723, %v725, %v721
    %v727 = vmul.f32 1.0, %v726
    %v728 = vrcp.pop %v668
    %v729 = vmul.f32 %v668, %v728
    %v730 = vsub.f32 1.0, %v729
    %v731 = vmul.f32 %v728, %v730
    %v732 = vadd.f32 %v728, %v731
    %vm733 = vweird.f32 %v668
    %vm734 = vweird.f32 %v728
    %vm735 = vmor %vm733, %vm734
    %v736 = vsel %vm735, %v728, %v732
    %v737 = vand.u32 2147483647, %v668
    %vm738 = vcmp.eq.f32.partialorder %v737, 8.507059e+37
    %v739 = vand.u32 %v668, 2147483648
    %v740 = vor.u32 1.1754944e-38, %v739
    %v741 = vsel %vm738, %v740, %v736
    %v742 = vmul.f32 1.0, %v741
    %v743 = vrcp.pop %v669
    %v744 = vmul.f32 %v669, %v743
    %v745 = vsub.f32 1.0, %v744
    %v746 = vmul.f32 %v743, %v745
    %v747 = vadd.f32 %v743, %v746
    %vm748 = vweird.f32 %v669
    %vm749 = vweird.f32 %v743
    %vm750 = vmor %vm748, %vm749
    %v751 = vsel %vm750, %v743, %v747
    %v752 = vand.u32 2147483647, %v669
    %vm753 = vcmp.eq.f32.partialorder %v752, 8.507059e+37
    %v754 = vand.u32 %v669, 2147483648
    %v755 = vor.u32 1.1754944e-38, %v754
    %v756 = vsel %vm753, %v755, %v751
    %v757 = vmul.f32 1.0, %v756
    %v758 = vrcp.pop %v670
    %v759 = vmul.f32 %v670, %v758
    %v760 = vsub.f32 1.0, %v759
    %v761 = vmul.f32 %v758, %v760
    %v762 = vadd.f32 %v758, %v761
    %vm763 = vweird.f32 %v670
    %vm764 = vweird.f32 %v758
    %vm765 = vmor %vm763, %vm764
    %v766 = vsel %vm765, %v758, %v762
    %v767 = vand.u32 2147483647, %v670
    %vm768 = vcmp.eq.f32.partialorder %v767, 8.507059e+37
    %v769 = vand.u32 %v670, 2147483648
    %v770 = vor.u32 1.1754944e-38, %v769
    %v771 = vsel %vm768, %v770, %v766
    %v772 = vmul.f32 1.0, %v771
    %v773 = vrcp.pop %v671
    %v774 = vmul.f32 %v671, %v773
    %v775 = vsub.f32 1.0, %v774
    %v776 = vmul.f32 %v773, %v775
    %v777 = vadd.f32 %v773, %v776
    %vm778 = vweird.f32 %v671
    %vm779 = vweird.f32 %v773
    %vm780 = vmor %vm778, %vm779
    %v781 = vsel %vm780, %v773, %v777
    %v782 = vand.u32 2147483647, %v671
    %vm783 = vcmp.eq.f32.partialorder %v782, 8.507059e+37
    %v784 = vand.u32 %v671, 2147483648
    %v785 = vor.u32 1.1754944e-38, %v784
    %v786 = vsel %vm783, %v785, %v781
    %v787 = vmul.f32 1.0, %v786
    %v788 = vrcp.pop %v672
    %v789 = vmul.f32 %v672, %v788
    %v790 = vsub.f32 1.0, %v789
    %v791 = vmul.f32 %v788, %v790
    %v792 = vadd.f32 %v788, %v791
    %vm793 = vweird.f32 %v672
    %vm794 = vweird.f32 %v788
    %vm795 = vmor %vm793, %vm794
    %v796 = vsel %vm795, %v788, %v792
    %v797 = vand.u32 2147483647, %v672
    %vm798 = vcmp.eq.f32.partialorder %v797, 8.507059e+37
    %v799 = vand.u32 %v672, 2147483648
    %v800 = vor.u32 1.1754944e-38, %v799
    %v801 = vsel %vm798, %v800, %v796
    %v802 = vmul.f32 1.0, %v801
    %v803 = vrcp.pop %v673
    %v804 = vmul.f32 %v673, %v803
    %v805 = vsub.f32 1.0, %v804
    %v806 = vmul.f32 %v803, %v805
    %v807 = vadd.f32 %v803, %v806
    %vm808 = vweird.f32 %v673
    %vm809 = vweird.f32 %v803
    %vm810 = vmor %vm808, %vm809
    %v811 = vsel %vm810, %v803, %v807
    %v812 = vand.u32 2147483647, %v673
    %vm813 = vcmp.eq.f32.partialorder %v812, 8.507059e+37
    %v814 = vand.u32 %v673, 2147483648
    %v815 = vor.u32 1.1754944e-38, %v814
    %v816 = vsel %vm813, %v815, %v811
    %v817 = vmul.f32 1.0, %v816
    %v818 = vrcp.pop %v674
    %v819 = vmul.f32 %v674, %v818
    %v820 = vsub.f32 1.0, %v819
    %v821 = vmul.f32 %v818, %v820
    %v822 = vadd.f32 %v818, %v821
    %vm823 = vweird.f32 %v674
    %vm824 = vweird.f32 %v818
    %vm825 = vmor %vm823, %vm824
    %v826 = vsel %vm825, %v818, %v822
    %v827 = vand.u32 2147483647, %v674
    %vm828 = vcmp.eq.f32.partialorder %v827, 8.507059e+37
    %v829 = vand.u32 %v674, 2147483648
    %v830 = vor.u32 1.1754944e-38, %v829
    %v831 = vsel %vm828, %v830, %v826
    %v832 = vmul.f32 1.0, %v831
    %v833 = vrcp.pop %v675
    %v834 = vmul.f32 %v675, %v833
    %v835 = vsub.f32 1.0, %v834
    %v836 = vmul.f32 %v833, %v835
    %v837 = vadd.f32 %v833, %v836
    %vm838 = vweird.f32 %v675
    %vm839 = vweird.f32 %v833
    %vm840 = vmor %vm838, %vm839
    %v841 = vsel %vm840, %v833, %v837
    %v842 = vand.u32 2147483647, %v675
    %vm843 = vcmp.eq.f32.partialorder %v842, 8.507059e+37
    %v844 = vand.u32 %v675, 2147483648
    %v845 = vor.u32 1.1754944e-38, %v844
    %v846 = vsel %vm843, %v845, %v841
    %v847 = vmul.f32 1.0, %v846
    %v848 = vrcp.pop %v676
    %v849 = vmul.f32 %v676, %v848
    %v850 = vsub.f32 1.0, %v849
    %v851 = vmul.f32 %v848, %v850
    %v852 = vadd.f32 %v848, %v851
    %vm853 = vweird.f32 %v676
    %vm854 = vweird.f32 %v848
    %vm855 = vmor %vm853, %vm854
    %v856 = vsel %vm855, %v848, %v852
    %v857 = vand.u32 2147483647, %v676
    %vm858 = vcmp.eq.f32.partialorder %v857, 8.507059e+37
    %v859 = vand.u32 %v676, 2147483648
    %v860 = vor.u32 1.1754944e-38, %v859
    %v861 = vsel %vm858, %v860, %v856
    %v862 = vmul.f32 1.0, %v861
    %v863 = vrcp.pop %v677
    %v864 = vmul.f32 %v677, %v863
    %v865 = vsub.f32 1.0, %v864
    %v866 = vmul.f32 %v863, %v865
    %v867 = vadd.f32 %v863, %v866
    %vm868 = vweird.f32 %v677
    %vm869 = vweird.f32 %v863
    %vm870 = vmor %vm868, %vm869
    %v871 = vsel %vm870, %v863, %v867
    %v872 = vand.u32 2147483647, %v677
    %vm873 = vcmp.eq.f32.partialorder %v872, 8.507059e+37
    %v874 = vand.u32 %v677, 2147483648
    %v875 = vor.u32 1.1754944e-38, %v874
    %v876 = vsel %vm873, %v875, %v871
    %v877 = vmul.f32 1.0, %v876
    %v878 = vrcp.pop %v678
    %v879 = vmul.f32 %v678, %v878
    %v880 = vsub.f32 1.0, %v879
    %v881 = vmul.f32 %v878, %v880
    %v882 = vadd.f32 %v878, %v881
    %vm883 = vweird.f32 %v678
    %vm884 = vweird.f32 %v878
    %vm885 = vmor %vm883, %vm884
    %v886 = vsel %vm885, %v878, %v882
    %v887 = vand.u32 2147483647, %v678
    %vm888 = vcmp.eq.f32.partialorder %v887, 8.507059e+37
    %v889 = vand.u32 %v678, 2147483648
    %v890 = vor.u32 1.1754944e-38, %v889
    %v891 = vsel %vm888, %v890, %v886
    %v892 = vmul.f32 1.0, %v891
    %v893 = vrcp.pop %v679
    %v894 = vmul.f32 %v679, %v893
    %v895 = vsub.f32 1.0, %v894
    %v896 = vmul.f32 %v893, %v895
    %v897 = vadd.f32 %v893, %v896
    %vm898 = vweird.f32 %v679
    %vm899 = vweird.f32 %v893
    %vm900 = vmor %vm898, %vm899
    %v901 = vsel %vm900, %v893, %v897
    %v902 = vand.u32 2147483647, %v679
    %vm903 = vcmp.eq.f32.partialorder %v902, 8.507059e+37
    %v904 = vand.u32 %v679, 2147483648
    %v905 = vor.u32 1.1754944e-38, %v904
    %v906 = vsel %vm903, %v905, %v901
    %v907 = vmul.f32 1.0, %v906
    %v908 = vrcp.pop %v680
    %v909 = vmul.f32 %v680, %v908
    %v910 = vsub.f32 1.0, %v909
    %v911 = vmul.f32 %v908, %v910
    %v912 = vadd.f32 %v908, %v911
    %vm913 = vweird.f32 %v680
    %vm914 = vweird.f32 %v908
    %vm915 = vmor %vm913, %vm914
    %v916 = vsel %vm915, %v908, %v912
    %v917 = vand.u32 2147483647, %v680
    %vm918 = vcmp.eq.f32.partialorder %v917, 8.507059e+37
    %v919 = vand.u32 %v680, 2147483648
    %v920 = vor.u32 1.1754944e-38, %v919
    %v921 = vsel %vm918, %v920, %v916
    %v922 = vmul.f32 1.0, %v921
    %v923 = vrcp.pop %v681
    %v924 = vmul.f32 %v681, %v923
    %v925 = vsub.f32 1.0, %v924
    %v926 = vmul.f32 %v923, %v925
    %v927 = vadd.f32 %v923, %v926
    %vm928 = vweird.f32 %v681
    %vm929 = vweird.f32 %v923
    %vm930 = vmor %vm928, %vm929
    %v931 = vsel %vm930, %v923, %v927
    %v932 = vand.u32 2147483647, %v681
    %vm933 = vcmp.eq.f32.partialorder %v932, 8.507059e+37
    %v934 = vand.u32 %v681, 2147483648
    %v935 = vor.u32 1.1754944e-38, %v934
    %v936 = vsel %vm933, %v935, %v931
    %v937 = vmul.f32 1.0, %v936
    %v938 = vrcp.pop %v682
    %v939 = vmul.f32 %v682, %v938
    %v940 = vsub.f32 1.0, %v939
    %v941 = vmul.f32 %v938, %v940
    %v942 = vadd.f32 %v938, %v941
    %vm943 = vweird.f32 %v682
    %vm944 = vweird.f32 %v938
    %vm945 = vmor %vm943, %vm944
    %v946 = vsel %vm945, %v938, %v942
    %v947 = vand.u32 2147483647, %v682
    %vm948 = vcmp.eq.f32.partialorder %v947, 8.507059e+37
    %v949 = vand.u32 %v682, 2147483648
    %v950 = vor.u32 1.1754944e-38, %v949
    %v951 = vsel %vm948, %v950, %v946
    %v952 = vmul.f32 1.0, %v951
    %v953 = vrcp.pop %v683
    %v954 = vmul.f32 %v683, %v953
    %v955 = vsub.f32 1.0, %v954
    %v956 = vmul.f32 %v953, %v955
    %v957 = vadd.f32 %v953, %v956
    %vm958 = vweird.f32 %v683
    %vm959 = vweird.f32 %v953
    %vm960 = vmor %vm958, %vm959
    %v961 = vsel %vm960, %v953, %v957
    %v962 = vand.u32 2147483647, %v683
    %vm963 = vcmp.eq.f32.partialorder %v962, 8.507059e+37
    %v964 = vand.u32 %v683, 2147483648
    %v965 = vor.u32 1.1754944e-38, %v964
    %v966 = vsel %vm963, %v965, %v961
    %v967 = vmul.f32 1.0, %v966
    %v968 = vrcp.pop %v684
    %v969 = vmul.f32 %v684, %v968
    %v970 = vsub.f32 1.0, %v969
    %v971 = vmul.f32 %v968, %v970
    %v972 = vadd.f32 %v968, %v971
    %vm973 = vweird.f32 %v684
    %vm974 = vweird.f32 %v968
    %vm975 = vmor %vm973, %vm974
    %v976 = vsel %vm975, %v968, %v972
    %v977 = vand.u32 2147483647, %v684
    %vm978 = vcmp.eq.f32.partialorder %v977, 8.507059e+37
    %v979 = vand.u32 %v684, 2147483648
    %v980 = vor.u32 1.1754944e-38, %v979
    %v981 = vsel %vm978, %v980, %v976
    %v982 = vmul.f32 1.0, %v981
    %v983 = vrcp.pop %v685
    %v984 = vmul.f32 %v685, %v983
    %v985 = vsub.f32 1.0, %v984
    %v986 = vmul.f32 %v983, %v985
    %v987 = vadd.f32 %v983, %v986
    %vm988 = vweird.f32 %v685
    %vm989 = vweird.f32 %v983
    %vm990 = vmor %vm988, %vm989
    %v991 = vsel %vm990, %v983, %v987
    %v992 = vand.u32 2147483647, %v685
    %vm993 = vcmp.eq.f32.partialorder %v992, 8.507059e+37
    %v994 = vand.u32 %v685, 2147483648
    %v995 = vor.u32 1.1754944e-38, %v994
    %v996 = vsel %vm993, %v995, %v991
    %v997 = vmul.f32 1.0, %v996
    %v998 = vrcp.pop %v686
    %v999 = vmul.f32 %v686, %v998
    %v1000 = vsub.f32 1.0, %v999
    %v1001 = vmul.f32 %v998, %v1000
    %v1002 = vadd.f32 %v998, %v1001
    %vm1003 = vweird.f32 %v686
    %vm1004 = vweird.f32 %v998
    %vm1005 = vmor %vm1003, %vm1004
    %v1006 = vsel %vm1005, %v998, %v1002
    %v1007 = vand.u32 2147483647, %v686
    %vm1008 = vcmp.eq.f32.partialorder %v1007, 8.507059e+37
    %v1009 = vand.u32 %v686, 2147483648
    %v1010 = vor.u32 1.1754944e-38, %v1009
    %v1011 = vsel %vm1008, %v1010, %v1006
    %v1012 = vmul.f32 1.0, %v1011
    %v1013 = vrcp.pop %v687
    %v1014 = vmul.f32 %v687, %v1013
    %v1015 = vsub.f32 1.0, %v1014
    %v1016 = vmul.f32 %v1013, %v1015
    %v1017 = vadd.f32 %v1013, %v1016
    %vm1018 = vweird.f32 %v687
    %vm1019 = vweird.f32 %v1013
    %vm1020 = vmor %vm1018, %vm1019
    %v1021 = vsel %vm1020, %v1013, %v1017
    %v1022 = vand.u32 2147483647, %v687
    %vm1023 = vcmp.eq.f32.partialorder %v1022, 8.507059e+37
    %v1024 = vand.u32 %v687, 2147483648
    %v1025 = vor.u32 1.1754944e-38, %v1024
    %v1026 = vsel %vm1023, %v1025, %v1021
    %v1027 = vmul.f32 1.0, %v1026
    %v1028 = vrcp.pop %v688
    %v1029 = vmul.f32 %v688, %v1028
    %v1030 = vsub.f32 1.0, %v1029
    %v1031 = vmul.f32 %v1028, %v1030
    %v1032 = vadd.f32 %v1028, %v1031
    %vm1033 = vweird.f32 %v688
    %vm1034 = vweird.f32 %v1028
    %vm1035 = vmor %vm1033, %vm1034
    %v1036 = vsel %vm1035, %v1028, %v1032
    %v1037 = vand.u32 2147483647, %v688
    %vm1038 = vcmp.eq.f32.partialorder %v1037, 8.507059e+37
    %v1039 = vand.u32 %v688, 2147483648
    %v1040 = vor.u32 1.1754944e-38, %v1039
    %v1041 = vsel %vm1038, %v1040, %v1036
    %v1042 = vmul.f32 1.0, %v1041
    %v1043 = vrcp.pop %v689
    %v1044 = vmul.f32 %v689, %v1043
    %v1045 = vsub.f32 1.0, %v1044
    %v1046 = vmul.f32 %v1043, %v1045
    %v1047 = vadd.f32 %v1043, %v1046
    %vm1048 = vweird.f32 %v689
    %vm1049 = vweird.f32 %v1043
    %vm1050 = vmor %vm1048, %vm1049
    %v1051 = vsel %vm1050, %v1043, %v1047
    %v1052 = vand.u32 2147483647, %v689
    %vm1053 = vcmp.eq.f32.partialorder %v1052, 8.507059e+37
    %v1054 = vand.u32 %v689, 2147483648
    %v1055 = vor.u32 1.1754944e-38, %v1054
    %v1056 = vsel %vm1053, %v1055, %v1051
    %v1057 = vmul.f32 1.0, %v1056
    %v1058 = vrcp.pop %v690
    %v1059 = vmul.f32 %v690, %v1058
    %v1060 = vsub.f32 1.0, %v1059
    %v1061 = vmul.f32 %v1058, %v1060
    %v1062 = vadd.f32 %v1058, %v1061
    %vm1063 = vweird.f32 %v690
    %vm1064 = vweird.f32 %v1058
    %vm1065 = vmor %vm1063, %vm1064
    %v1066 = vsel %vm1065, %v1058, %v1062
    %v1067 = vand.u32 2147483647, %v690
    %vm1068 = vcmp.eq.f32.partialorder %v1067, 8.507059e+37
    %v1069 = vand.u32 %v690, 2147483648
    %v1070 = vor.u32 1.1754944e-38, %v1069
    %v1071 = vsel %vm1068, %v1070, %v1066
    %v1072 = vmul.f32 1.0, %v1071
    %v1073 = vrcp.pop %v691
    %v1074 = vmul.f32 %v691, %v1073
    %v1075 = vsub.f32 1.0, %v1074
    %v1076 = vmul.f32 %v1073, %v1075
    %v1077 = vadd.f32 %v1073, %v1076
    %vm1078 = vweird.f32 %v691
    %vm1079 = vweird.f32 %v1073
    %vm1080 = vmor %vm1078, %vm1079
    %v1081 = vsel %vm1080, %v1073, %v1077
    %v1082 = vand.u32 2147483647, %v691
    %vm1083 = vcmp.eq.f32.partialorder %v1082, 8.507059e+37
    %v1084 = vand.u32 %v691, 2147483648
    %v1085 = vor.u32 1.1754944e-38, %v1084
    %v1086 = vsel %vm1083, %v1085, %v1081
    %v1087 = vmul.f32 1.0, %v1086
    %v1088 = vrcp.pop %v692
    %v1089 = vmul.f32 %v692, %v1088
    %v1090 = vsub.f32 1.0, %v1089
    %v1091 = vmul.f32 %v1088, %v1090
    %v1092 = vadd.f32 %v1088, %v1091
    %vm1093 = vweird.f32 %v692
    %vm1094 = vweird.f32 %v1088
    %vm1095 = vmor %vm1093, %vm1094
    %v1096 = vsel %vm1095, %v1088, %v1092
    %v1097 = vand.u32 2147483647, %v692
    %vm1098 = vcmp.eq.f32.partialorder %v1097, 8.507059e+37
    %v1099 = vand.u32 %v692, 2147483648
    %v1100 = vor.u32 1.1754944e-38, %v1099
    %v1101 = vsel %vm1098, %v1100, %v1096
    %v1102 = vmul.f32 1.0, %v1101
    %v1103 = vrcp.pop %v693
    %v1104 = vmul.f32 %v693, %v1103
    %v1105 = vsub.f32 1.0, %v1104
    %v1106 = vmul.f32 %v1103, %v1105
    %v1107 = vadd.f32 %v1103, %v1106
    %vm1108 = vweird.f32 %v693
    %vm1109 = vweird.f32 %v1103
    %vm1110 = vmor %vm1108, %vm1109
    %v1111 = vsel %vm1110, %v1103, %v1107
    %v1112 = vand.u32 2147483647, %v693
    %vm1113 = vcmp.eq.f32.partialorder %v1112, 8.507059e+37
    %v1114 = vand.u32 %v693, 2147483648
    %v1115 = vor.u32 1.1754944e-38, %v1114
    %v1116 = vsel %vm1113, %v1115, %v1111
    %v1117 = vmul.f32 1.0, %v1116
    %v1118 = vrcp.pop %v694
    %v1119 = vmul.f32 %v694, %v1118
    %v1120 = vsub.f32 1.0, %v1119
    %v1121 = vmul.f32 %v1118, %v1120
    %v1122 = vadd.f32 %v1118, %v1121
    %vm1123 = vweird.f32 %v694
    %vm1124 = vweird.f32 %v1118
    %vm1125 = vmor %vm1123, %vm1124
    %v1126 = vsel %vm1125, %v1118, %v1122
    %v1127 = vand.u32 2147483647, %v694
    %vm1128 = vcmp.eq.f32.partialorder %v1127, 8.507059e+37
    %v1129 = vand.u32 %v694, 2147483648
    %v1130 = vor.u32 1.1754944e-38, %v1129
    %v1131 = vsel %vm1128, %v1130, %v1126
    %v1132 = vmul.f32 1.0, %v1131
    %v1133 = vrcp.pop %v695
    %v1134 = vmul.f32 %v695, %v1133
    %v1135 = vsub.f32 1.0, %v1134
    %v1136 = vmul.f32 %v1133, %v1135
    %v1137 = vadd.f32 %v1133, %v1136
    %vm1138 = vweird.f32 %v695
    %vm1139 = vweird.f32 %v1133
    %vm1140 = vmor %vm1138, %vm1139
    %v1141 = vsel %vm1140, %v1133, %v1137
    %v1142 = vand.u32 2147483647, %v695
    %vm1143 = vcmp.eq.f32.partialorder %v1142, 8.507059e+37
    %v1144 = vand.u32 %v695, 2147483648
    %v1145 = vor.u32 1.1754944e-38, %v1144
    %v1146 = vsel %vm1143, %v1145, %v1141
    %v1147 = vmul.f32 1.0, %v1146
    %v1148 = vrcp.pop %v696
    %v1149 = vmul.f32 %v696, %v1148
    %v1150 = vsub.f32 1.0, %v1149
    %v1151 = vmul.f32 %v1148, %v1150
    %v1152 = vadd.f32 %v1148, %v1151
    %vm1153 = vweird.f32 %v696
    %vm1154 = vweird.f32 %v1148
    %vm1155 = vmor %vm1153, %vm1154
    %v1156 = vsel %vm1155, %v1148, %v1152
    %v1157 = vand.u32 2147483647, %v696
    %vm1158 = vcmp.eq.f32.partialorder %v1157, 8.507059e+37
    %v1159 = vand.u32 %v696, 2147483648
    %v1160 = vor.u32 1.1754944e-38, %v1159
    %v1161 = vsel %vm1158, %v1160, %v1156
    %v1162 = vmul.f32 1.0, %v1161
    %v1163 = vrcp.pop %v697
    %v1164 = vmul.f32 %v697, %v1163
    %v1165 = vsub.f32 1.0, %v1164
    %v1166 = vmul.f32 %v1163, %v1165
    %v1167 = vadd.f32 %v1163, %v1166
    %vm1168 = vweird.f32 %v697
    %vm1169 = vweird.f32 %v1163
    %vm1170 = vmor %vm1168, %vm1169
    %v1171 = vsel %vm1170, %v1163, %v1167
    %v1172 = vand.u32 2147483647, %v697
    %vm1173 = vcmp.eq.f32.partialorder %v1172, 8.507059e+37
    %v1174 = vand.u32 %v697, 2147483648
    %v1175 = vor.u32 1.1754944e-38, %v1174
    %v1176 = vsel %vm1173, %v1175, %v1171
    %v1177 = vmul.f32 1.0, %v1176
    %v1178 = vmul.f32 %v37, %v712
    %v1179 = vmul.f32 %v38, %v727
    %v1180 = vmul.f32 %v39, %v742
    %v1181 = vmul.f32 %v40, %v757
    %v1182 = vmul.f32 %v41, %v772
    %v1183 = vmul.f32 %v42, %v787
    %v1184 = vmul.f32 %v43, %v802
    %v1185 = vmul.f32 %v44, %v817
    %v1186 = vmul.f32 %v45, %v832
    %v1187 = vmul.f32 %v46, %v847
    %v1188 = vmul.f32 %v47, %v862
    %v1189 = vmul.f32 %v48, %v877
    %v1190 = vmul.f32 %v49, %v892
    %v1191 = vmul.f32 %v50, %v907
    %v1192 = vmul.f32 %v51, %v922
    %v1193 = vmul.f32 %v52, %v937
    %v1194 = vmul.f32 %v53, %v952
    %v1195 = vmul.f32 %v54, %v967
    %v1196 = vmul.f32 %v55, %v982
    %v1197 = vmul.f32 %v56, %v997
    %v1198 = vmul.f32 %v57, %v1012
    %v1199 = vmul.f32 %v58, %v1027
    %v1200 = vmul.f32 %v59, %v1042
    %v1201 = vmul.f32 %v60, %v1057
    %v1202 = vmul.f32 %v61, %v1072
    %v1203 = vmul.f32 %v62, %v1087
    %v1204 = vmul.f32 %v63, %v1102
    %v1205 = vmul.f32 %v64, %v1117
    %v1206 = vmul.f32 %v65, %v1132
    %v1207 = vmul.f32 %v66, %v1147
    %v1208 = vmul.f32 %v67, %v1162
    %v1209 = vmul.f32 %v68, %v1177
    %v1210 = vadd.f32 %v1178, %v197
    %v1211 = vadd.f32 %v1179, %v199
    %v1212 = vadd.f32 %v1180, %v202
    %v1213 = vadd.f32 %v1181, %v204
    %v1214 = vadd.f32 %v1182, %v207
    %v1215 = vadd.f32 %v1183, %v209
    %v1216 = vadd.f32 %v1184, %v212
    %v1217 = vadd.f32 %v1185, %v214
    %v1218 = vadd.f32 %v1186, %v217
    %v1219 = vadd.f32 %v1187, %v219
    %v1220 = vadd.f32 %v1188, %v222
    %v1221 = vadd.f32 %v1189, %v224
    %v1222 = vadd.f32 %v1190, %v227
    %v1223 = vadd.f32 %v1191, %v229
    %v1224 = vadd.f32 %v1192, %v232
    %v1225 = vadd.f32 %v1193, %v234
    %v1226 = vadd.f32 %v1194, %v237
    %v1227 = vadd.f32 %v1195, %v239
    %v1228 = vadd.f32 %v1196, %v242
    %v1229 = vadd.f32 %v1197, %v244
    %v1230 = vadd.f32 %v1198, %v247
    %v1231 = vadd.f32 %v1199, %v249
    %v1232 = vadd.f32 %v1200, %v252
    %v1233 = vadd.f32 %v1201, %v254
    %v1234 = vadd.f32 %v1202, %v257
    %v1235 = vadd.f32 %v1203, %v259
    %v1236 = vadd.f32 %v1204, %v262
    %v1237 = vadd.f32 %v1205, %v264
    %v1238 = vadd.f32 %v1206, %v267
    %v1239 = vadd.f32 %v1207, %v269
    %v1240 = vadd.f32 %v1208, %v272
    %v1241 = vadd.f32 %v1209, %v274
    %1242 = vst [vmem:[#allocation5] sm:$0xff] %v1210
    %1243 = vst [vmem:[#allocation5 + $0x8] sm:$0xff] %v1211
    %1244 = vst [vmem:[#allocation5 + $0x10] sm:$0xff] %v1212
    %1245 = vst [vmem:[#allocation5 + $0x18] sm:$0xff] %v1213
    %1246 = vst [vmem:[#allocation5 + $0x20] sm:$0xff] %v1214
    %1247 = vst [vmem:[#allocation5 + $0x28] sm:$0xff] %v1215
    %1248 = vst [vmem:[#allocation5 + $0x30] sm:$0xff] %v1216
    %1249 = vst [vmem:[#allocation5 + $0x38] sm:$0xff] %v1217
    %1250 = vst [vmem:[#allocation5 + $0x40] sm:$0xff] %v1218
    %1251 = vst [vmem:[#allocation5 + $0x48] sm:$0xff] %v1219
    %1252 = vst [vmem:[#allocation5 + $0x50] sm:$0xff] %v1220
    %1253 = vst [vmem:[#allocation5 + $0x58] sm:$0xff] %v1221
    %1254 = vst [vmem:[#allocation5 + $0x60] sm:$0xff] %v1222
    %1255 = vst [vmem:[#allocation5 + $0x68] sm:$0xff] %v1223
    %1256 = vst [vmem:[#allocation5 + $0x70] sm:$0xff] %v1224
    %1257 = vst [vmem:[#allocation5 + $0x78] sm:$0xff] %v1225
    %1258 = vst [vmem:[#allocation5 + $0x80] sm:$0xff] %v1226
    %1259 = vst [vmem:[#allocation5 + $0x88] sm:$0xff] %v1227
    %1260 = vst [vmem:[#allocation5 + $0x90] sm:$0xff] %v1228
    %1261 = vst [vmem:[#allocation5 + $0x98] sm:$0xff] %v1229
    %1262 = vst [vmem:[#allocation5 + $0xa0] sm:$0xff] %v1230
    %1263 = vst [vmem:[#allocation5 + $0xa8] sm:$0xff] %v1231
    %1264 = vst [vmem:[#allocation5 + $0xb0] sm:$0xff] %v1232
    %1265 = vst [vmem:[#allocation5 + $0xb8] sm:$0xff] %v1233
    %1266 = vst [vmem:[#allocation5 + $0xc0] sm:$0xff] %v1234
    %1267 = vst [vmem:[#allocation5 + $0xc8] sm:$0xff] %v1235
    %1268 = vst [vmem:[#allocation5 + $0xd0] sm:$0xff] %v1236
    %1269 = vst [vmem:[#allocation5 + $0xd8] sm:$0xff] %v1237
    %1270 = vst [vmem:[#allocation5 + $0xe0] sm:$0xff] %v1238
    %1271 = vst [vmem:[#allocation5 + $0xe8] sm:$0xff] %v1239
    %1272 = vst [vmem:[#allocation5 + $0xf0] sm:$0xff] %v1240
    %1273 = vst [vmem:[#allocation5 + $0xf8] sm:$0xff] %v1241
    // Predicated region
    $region26: #{tpu_custom_call.1} parent=1 // pred_check
      _
    $region27: #{tpu_custom_call.1} parent=1 // pred_check_branch
      %1275 = sbr.rel (0) target = $region29
    $region28: #{tpu_custom_call.1} parent=1 // pred_region
      %1277 = vsyncadd [#allocation4], 0
      %s1278 = sshll.u32 [#allocation5], 4
      %s1279 = int_to_ptr.vmem [resolvable:$true] %s1278
      %s1280 = sshll.u32 %s5, 4
      %s1281 = int_to_ptr.hbm [resolvable:$true] %s1280
      %1286 = dma.vmem_to_hbm [thread:$0]  %s1279, 4096, %s1281, [#allocation4], 128, 128, 8
    $region29: #{tpu_custom_call.1} parent=1 // pred_fallthru
      _
    // Predicated region
    $region30: #{tpu_custom_call.1} parent=1 // pred_check
      _
    $region31: #{tpu_custom_call.1} parent=1 // pred_check_branch
      %1288 = sbr.rel (0) target = $region33
    $region32: #{tpu_custom_call.1} parent=1 // pred_region
      %1290 = dma.done [#allocation4], 4096
    $region33: #{tpu_custom_call.1} parent=1 // pred_fallthru
      _
    %1291 = vsyncpa [#allocation3], 1
    %1292 = vsyncpa [#allocation4], 1

// kernel: tpu_custom_call.1
$region0: #{tpu_custom_call.1}
  #allocation0 [shape = 'u32[]', space=smem, size = 0x4, offset = 0x4, fixed_abs, tag = 'smem constant byte address 0x4 - core index']
  #allocation1 [shape = 'u32[72,128]{1,0:T(1,128)}', space=vmem, size = 0x9000, scoped, tag = 'internal scratch']
  %s0 = inlined_call_operand.hbm [shape: f32[256,128], index: 0, kind: input, shape index: {}, may-alias: {0,5}]
  %s1 = inlined_call_operand.vmem [shape: bf16[128,256], index: 1, kind: input, shape index: {}]
  %s2 = inlined_call_operand.vmem [shape: f32[1,256], index: 2, kind: input, shape index: {}]
  %s3 = inlined_call_operand.vmem [shape: bf16[128,128], index: 3, kind: input, shape index: {}]
  %s4 = inlined_call_operand.vmem [shape: f32[1,128], index: 4, kind: input, shape index: {}]
  %s5 = inlined_call_operand.hbm [shape: f32[256,128], index: 5, kind: output, shape index: {}, may-alias: {0,5}]
  %s6 = sld [smem:[#allocation0]]
  $region34: #{tpu_custom_call.1} parent=0
    _
  %s8 = ssub.s32 1, %s6
  %s9 = scalar_select 0, %s8, %s6
  $region1: #{tpu_custom_call.1} parent=0
    #allocation2 [shape = 'u8[131072]{0}', space=vmem, size = 0x20000, scoped, tag = 'input window, operand 0, single buffered']
    #allocation3 [shape = 's32[1]{0}', space=sflag, size = 0x4, scoped, tag = 'scoped memory for tpu_custom_call.1']
    #allocation4 [shape = 's32[1]{0}', space=sflag, size = 0x4, scoped, tag = 'scoped memory for tpu_custom_call.1']
    #allocation5 [shape = 'u8[131072]{0}', space=vmem, size = 0x20000, scoped, tag = 'output window, operand 0, single buffered']
    %10 = vsyncpa [#allocation3], 0
    %11 = vsyncpa [#allocation4], 0
    // Predicated region
    $region2: #{tpu_custom_call.1} parent=1 // pred_check
      _
    $region3: #{tpu_custom_call.1} parent=1 // pred_check_branch
      %13 = sbr.rel (0) target = $region5
    $region4: #{tpu_custom_call.1} parent=1 // pred_region
      %15 = vsyncadd [#allocation3], 0
      %s16 = sshll.u32 %s0, 4
      %s17 = int_to_ptr.hbm [resolvable:$true] %s16
      %s18 = sshll.u32 [#allocation2], 4
      %s19 = int_to_ptr.vmem [resolvable:$true] %s18
      %24 = dma.hbm_to_vmem [thread:$0]  %s17, 4096, %s19, [#allocation3], 128, 128, 8
    $region5: #{tpu_custom_call.1} parent=1 // pred_fallthru
      _
    // Predicated region
    $region6: #{tpu_custom_call.1} parent=1 // pred_check
      _
    $region7: #{tpu_custom_call.1} parent=1 // pred_check_branch
      %26 = sbr.rel (0) target = $region9
    $region8: #{tpu_custom_call.1} parent=1 // pred_region
      _
    $region9: #{tpu_custom_call.1} parent=1 // pred_fallthru
      _
    // Predicated region
    $region10: #{tpu_custom_call.1} parent=1 // pred_check
      _
    $region11: #{tpu_custom_call.1} parent=1 // pred_check_branch
      %28 = sbr.rel (0) target = $region13
    $region12: #{tpu_custom_call.1} parent=1 // pred_region
      _
    $region13: #{tpu_custom_call.1} parent=1 // pred_fallthru
      _
    // Predicated region
    $region14: #{tpu_custom_call.1} parent=1 // pred_check
      _
    $region15: #{tpu_custom_call.1} parent=1 // pred_check_branch
      %30 = sbr.rel (0) target = $region17
    $region16: #{tpu_custom_call.1} parent=1 // pred_region
      _
    $region17: #{tpu_custom_call.1} parent=1 // pred_fallthru
      _
    // Predicated region
    $region18: #{tpu_custom_call.1} parent=1 // pred_check
      _
    $region19: #{tpu_custom_call.1} parent=1 // pred_check_branch
      %32 = sbr.rel (0) target = $region21
    $region20: #{tpu_custom_call.1} parent=1 // pred_region
      _
    $region21: #{tpu_custom_call.1} parent=1 // pred_fallthru
      _
    // Predicated region
    $region22: #{tpu_custom_call.1} parent=1 // pred_check
      _
    $region23: #{tpu_custom_call.1} parent=1 // pred_check_branch
      %34 = sbr.rel (0) target = $region25
    $region24: #{tpu_custom_call.1} parent=1 // pred_region
      %36 = dma.done [#allocation3], 4096
    $region25: #{tpu_custom_call.1} parent=1 // pred_fallthru
      _
    %v37 = vld [vmem:[#allocation2] sm:$0xff]
    %v38 = vld [vmem:[#allocation2 + $0x8] sm:$0xff]
    %v39 = vld [vmem:[#allocation2 + $0x10] sm:$0xff]
    %v40 = vld [vmem:[#allocation2 + $0x18] sm:$0xff]
    %v41 = vld [vmem:[#allocation2 + $0x20] sm:$0xff]
    %v42 = vld [vmem:[#allocation2 + $0x28] sm:$0xff]
    %v43 = vld [vmem:[#allocation2 + $0x30] sm:$0xff]
    %v44 = vld [vmem:[#allocation2 + $0x38] sm:$0xff]
    %v45 = vld [vmem:[#allocation2 + $0x40] sm:$0xff]
    %v46 = vld [vmem:[#allocation2 + $0x48] sm:$0xff]
    %v47 = vld [vmem:[#allocation2 + $0x50] sm:$0xff]
    %v48 = vld [vmem:[#allocation2 + $0x58] sm:$0xff]
    %v49 = vld [vmem:[#allocation2 + $0x60] sm:$0xff]
    %v50 = vld [vmem:[#allocation2 + $0x68] sm:$0xff]
    %v51 = vld [vmem:[#allocation2 + $0x70] sm:$0xff]
    %v52 = vld [vmem:[#allocation2 + $0x78] sm:$0xff]
    %v53 = vld [vmem:[#allocation2 + $0x80] sm:$0xff]
    %v54 = vld [vmem:[#allocation2 + $0x88] sm:$0xff]
    %v55 = vld [vmem:[#allocation2 + $0x90] sm:$0xff]
    %v56 = vld [vmem:[#allocation2 + $0x98] sm:$0xff]
    %v57 = vld [vmem:[#allocation2 + $0xa0] sm:$0xff]
    %v58 = vld [vmem:[#allocation2 + $0xa8] sm:$0xff]
    %v59 = vld [vmem:[#allocation2 + $0xb0] sm:$0xff]
    %v60 = vld [vmem:[#allocation2 + $0xb8] sm:$0xff]
    %v61 = vld [vmem:[#allocation2 + $0xc0] sm:$0xff]
    %v62 = vld [vmem:[#allocation2 + $0xc8] sm:$0xff]
    %v63 = vld [vmem:[#allocation2 + $0xd0] sm:$0xff]
    %v64 = vld [vmem:[#allocation2 + $0xd8] sm:$0xff]
    %v65 = vld [vmem:[#allocation2 + $0xe0] sm:$0xff]
    %v66 = vld [vmem:[#allocation2 + $0xe8] sm:$0xff]
    %v67 = vld [vmem:[#allocation2 + $0xf0] sm:$0xff]
    %v68 = vld [vmem:[#allocation2 + $0xf8] sm:$0xff]
    %v69 = vpack.c.bf16 %v38, %v37
    %v70 = vpack.c.bf16 %v40, %v39
    %v71 = vpack.c.bf16 %v42, %v41
    %v72 = vpack.c.bf16 %v44, %v43
    %v73 = vpack.c.bf16 %v46, %v45
    %v74 = vpack.c.bf16 %v48, %v47
    %v75 = vpack.c.bf16 %v50, %v49
    %v76 = vpack.c.bf16 %v52, %v51
    %v77 = vpack.c.bf16 %v54, %v53
    %v78 = vpack.c.bf16 %v56, %v55
    %v79 = vpack.c.bf16 %v58, %v57
    %v80 = vpack.c.bf16 %v60, %v59
    %v81 = vpack.c.bf16 %v62, %v61
    %v82 = vpack.c.bf16 %v64, %v63
    %v83 = vpack.c.bf16 %v66, %v65
    %v84 = vpack.c.bf16 %v68, %v67
    %v85 = vld [vmem:[%s1] sm:$0xff]
    %v86 = vld [vmem:[%s1 + $0x8] sm:$0xff]
    %v87 = vld [vmem:[%s1 + $0x10] sm:$0xff]
    %v88 = vld [vmem:[%s1 + $0x18] sm:$0xff]
    %v89 = vld [vmem:[%s1 + $0x20] sm:$0xff]
    %v90 = vld [vmem:[%s1 + $0x28] sm:$0xff]
    %v91 = vld [vmem:[%s1 + $0x30] sm:$0xff]
    %v92 = vld [vmem:[%s1 + $0x38] sm:$0xff]
    %v93 = vld [vmem:[%s1 + $0x40] sm:$0xff]
    %v94 = vld [vmem:[%s1 + $0x48] sm:$0xff]
    %v95 = vld [vmem:[%s1 + $0x50] sm:$0xff]
    %v96 = vld [vmem:[%s1 + $0x58] sm:$0xff]
    %v97 = vld [vmem:[%s1 + $0x60] sm:$0xff]
    %v98 = vld [vmem:[%s1 + $0x68] sm:$0xff]
    %v99 = vld [vmem:[%s1 + $0x70] sm:$0xff]
    %v100 = vld [vmem:[%s1 + $0x78] sm:$0xff]
    %v101 = vld [vmem:[%s2] sm:$0x3]
    %v103 = vperm.slane %v101, 0
    %v104 = vperm.slane %v101, 1
    %v123 = vunpack.c.l.b16 %v85
    %v124 = vunpack.c.h.b16 %v85
    %v125 = vunpack.c.l.b16 %v86
    %v126 = vunpack.c.h.b16 %v86
    %v127 = vunpack.c.l.b16 %v87
    %v128 = vunpack.c.h.b16 %v87
    %v129 = vunpack.c.l.b16 %v88
    %v130 = vunpack.c.h.b16 %v88
    %v131 = vunpack.c.l.b16 %v89
    %v132 = vunpack.c.h.b16 %v89
    %v133 = vunpack.c.l.b16 %v90
    %v134 = vunpack.c.h.b16 %v90
    %v135 = vunpack.c.l.b16 %v91
    %v136 = vunpack.c.h.b16 %v91
    %v137 = vunpack.c.l.b16 %v92
    %v138 = vunpack.c.h.b16 %v92
    %v139 = vunpack.c.l.b16 %v93
    %v140 = vunpack.c.h.b16 %v93
    %v141 = vunpack.c.l.b16 %v94
    %v142 = vunpack.c.h.b16 %v94
    %v143 = vunpack.c.l.b16 %v95
    %v144 = vunpack.c.h.b16 %v95
    %v145 = vunpack.c.l.b16 %v96
    %v146 = vunpack.c.h.b16 %v96
    %v147 = vunpack.c.l.b16 %v97
    %v148 = vunpack.c.h.b16 %v97
    %v149 = vunpack.c.l.b16 %v98
    %v150 = vunpack.c.h.b16 %v98
    %v151 = vunpack.c.l.b16 %v99
    %v152 = vunpack.c.h.b16 %v99
    %v153 = vunpack.c.l.b16 %v100
    %v154 = vunpack.c.h.b16 %v100
    %v155 = vpack.c.b16 %v125, %v123
    %v156 = vpack.c.b16 %v126, %v124
    %v157 = vpack.c.b16 %v129, %v127
    %v158 = vpack.c.b16 %v130, %v128
    %v159 = vpack.c.b16 %v133, %v131
    %v160 = vpack.c.b16 %v134, %v132
    %v161 = vpack.c.b16 %v137, %v135
    %v162 = vpack.c.b16 %v138, %v136
    %v163 = vpack.c.b16 %v141, %v139
    %v164 = vpack.c.b16 %v142, %v140
    %v165 = vpack.c.b16 %v145, %v143
    %v166 = vpack.c.b16 %v146, %v144
    %v167 = vpack.c.b16 %v149, %v147
    %v168 = vpack.c.b16 %v150, %v148
    %v169 = vpack.c.b16 %v153, %v151
    %v170 = vpack.c.b16 %v154, %v152
    %187 = vmatpush.bf16.msra.mxu0 %v169
    %188 = vmatpush.bf16.msra.mxu0 %v167
    %189 = vmatpush.bf16.msra.mxu0 %v165
    %190 = vmatpush.bf16.msra.mxu0 %v163
    %191 = vmatpush.bf16.msra.mxu0 %v161
    %192 = vmatpush.bf16.msra.mxu0 %v159
    %193 = vmatpush.bf16.msra.mxu0 %v157
    %194 = vmatpush.bf16.msra.mxu0 %v155
    %195 = vmatmul.bf16.gmra.mxu0 %v69
    %v196 = vpop.f32.mrf.mxu0
    %v197 = vadd.f32 %v103, %v196
    %v198 = vpop.f32.mrf.mxu0
    %v199 = vadd.f32 %v103, %v198
    %200 = vmatmul.bf16.gmra.mxu0 %v70
    %v201 = vpop.f32.mrf.mxu0
    %v202 = vadd.f32 %v103, %v201
    %v203 = vpop.f32.mrf.mxu0
    %v204 = vadd.f32 %v103, %v203
    %205 = vmatmul.bf16.gmra.mxu0 %v71
    %v206 = vpop.f32.mrf.mxu0
    %v207 = vadd.f32 %v103, %v206
    %v208 = vpop.f32.mrf.mxu0
    %v209 = vadd.f32 %v103, %v208
    %210 = vmatmul.bf16.gmra.mxu0 %v72
    %v211 = vpop.f32.mrf.mxu0
    %v212 = vadd.f32 %v103, %v211
    %v213 = vpop.f32.mrf.mxu0
    %v214 = vadd.f32 %v103, %v213
    %215 = vmatmul.bf16.gmra.mxu0 %v73
    %v216 = vpop.f32.mrf.mxu0
    %v217 = vadd.f32 %v103, %v216
    %v218 = vpop.f32.mrf.mxu0
    %v219 = vadd.f32 %v103, %v218
    %220 = vmatmul.bf16.gmra.mxu0 %v74
    %v221 = vpop.f32.mrf.mxu0
    %v222 = vadd.f32 %v103, %v221
    %v223 = vpop.f32.mrf.mxu0
    %v224 = vadd.f32 %v103, %v223
    %225 = vmatmul.bf16.gmra.mxu0 %v75
    %v226 = vpop.f32.mrf.mxu0
    %v227 = vadd.f32 %v103, %v226
    %v228 = vpop.f32.mrf.mxu0
    %v229 = vadd.f32 %v103, %v228
    %230 = vmatmul.bf16.gmra.mxu0 %v76
    %v231 = vpop.f32.mrf.mxu0
    %v232 = vadd.f32 %v103, %v231
    %v233 = vpop.f32.mrf.mxu0
    %v234 = vadd.f32 %v103, %v233
    %235 = vmatmul.bf16.gmra.mxu0 %v77
    %v236 = vpop.f32.mrf.mxu0
    %v237 = vadd.f32 %v103, %v236
    %v238 = vpop.f32.mrf.mxu0
    %v239 = vadd.f32 %v103, %v238
    %240 = vmatmul.bf16.gmra.mxu0 %v78
    %v241 = vpop.f32.mrf.mxu0
    %v242 = vadd.f32 %v103, %v241
    %v243 = vpop.f32.mrf.mxu0
    %v244 = vadd.f32 %v103, %v243
    %245 = vmatmul.bf16.gmra.mxu0 %v79
    %v246 = vpop.f32.mrf.mxu0
    %v247 = vadd.f32 %v103, %v246
    %v248 = vpop.f32.mrf.mxu0
    %v249 = vadd.f32 %v103, %v248
    %250 = vmatmul.bf16.gmra.mxu0 %v80
    %v251 = vpop.f32.mrf.mxu0
    %v252 = vadd.f32 %v103, %v251
    %v253 = vpop.f32.mrf.mxu0
    %v254 = vadd.f32 %v103, %v253
    %255 = vmatmul.bf16.gmra.mxu0 %v81
    %v256 = vpop.f32.mrf.mxu0
    %v257 = vadd.f32 %v103, %v256
    %v258 = vpop.f32.mrf.mxu0
    %v259 = vadd.f32 %v103, %v258
    %260 = vmatmul.bf16.gmra.mxu0 %v82
    %v261 = vpop.f32.mrf.mxu0
    %v262 = vadd.f32 %v103, %v261
    %v263 = vpop.f32.mrf.mxu0
    %v264 = vadd.f32 %v103, %v263
    %265 = vmatmul.bf16.gmra.mxu0 %v83
    %v266 = vpop.f32.mrf.mxu0
    %v267 = vadd.f32 %v103, %v266
    %v268 = vpop.f32.mrf.mxu0
    %v269 = vadd.f32 %v103, %v268
    %270 = vmatmul.bf16.gmra.mxu0 %v84
    %v271 = vpop.f32.mrf.mxu0
    %v272 = vadd.f32 %v103, %v271
    %v273 = vpop.f32.mrf.mxu0
    %v274 = vadd.f32 %v103, %v273
    %275 = vdwg.mxu0
    %276 = vmatpush.bf16.msra.mxu0 %v170
    %277 = vmatpush.bf16.msra.mxu0 %v168
    %278 = vmatpush.bf16.msra.mxu0 %v166
    %279 = vmatpush.bf16.msra.mxu0 %v164
    %280 = vmatpush.bf16.msra.mxu0 %v162
    %281 = vmatpush.bf16.msra.mxu0 %v160
    %282 = vmatpush.bf16.msra.mxu0 %v158
    %283 = vmatpush.bf16.msra.mxu0 %v156
    %284 = vmatmul.bf16.gmra.mxu0 %v69
    %v285 = vpop.f32.mrf.mxu0
    %v286 = vadd.f32 %v104, %v285
    %v287 = vpop.f32.mrf.mxu0
    %v288 = vadd.f32 %v104, %v287
    %289 = vmatmul.bf16.gmra.mxu0 %v70
    %v290 = vpop.f32.mrf.mxu0
    %v291 = vadd.f32 %v104, %v290
    %v292 = vpop.f32.mrf.mxu0
    %v293 = vadd.f32 %v104, %v292
    %294 = vmatmul.bf16.gmra.mxu0 %v71
    %v295 = vpop.f32.mrf.mxu0
    %v296 = vadd.f32 %v104, %v295
    %v297 = vpop.f32.mrf.mxu0
    %v298 = vadd.f32 %v104, %v297
    %299 = vmatmul.bf16.gmra.mxu0 %v72
    %v300 = vpop.f32.mrf.mxu0
    %v301 = vadd.f32 %v104, %v300
    %v302 = vpop.f32.mrf.mxu0
    %v303 = vadd.f32 %v104, %v302
    %304 = vmatmul.bf16.gmra.mxu0 %v73
    %v305 = vpop.f32.mrf.mxu0
    %v306 = vadd.f32 %v104, %v305
    %v307 = vpop.f32.mrf.mxu0
    %v308 = vadd.f32 %v104, %v307
    %309 = vmatmul.bf16.gmra.mxu0 %v74
    %v310 = vpop.f32.mrf.mxu0
    %v311 = vadd.f32 %v104, %v310
    %v312 = vpop.f32.mrf.mxu0
    %v313 = vadd.f32 %v104, %v312
    %314 = vmatmul.bf16.gmra.mxu0 %v75
    %v315 = vpop.f32.mrf.mxu0
    %v316 = vadd.f32 %v104, %v315
    %v317 = vpop.f32.mrf.mxu0
    %v318 = vadd.f32 %v104, %v317
    %319 = vmatmul.bf16.gmra.mxu0 %v76
    %v320 = vpop.f32.mrf.mxu0
    %v321 = vadd.f32 %v104, %v320
    %v322 = vpop.f32.mrf.mxu0
    %v323 = vadd.f32 %v104, %v322
    %324 = vmatmul.bf16.gmra.mxu0 %v77
    %v325 = vpop.f32.mrf.mxu0
    %v326 = vadd.f32 %v104, %v325
    %v327 = vpop.f32.mrf.mxu0
    %v328 = vadd.f32 %v104, %v327
    %329 = vmatmul.bf16.gmra.mxu0 %v78
    %v330 = vpop.f32.mrf.mxu0
    %v331 = vadd.f32 %v104, %v330
    %v332 = vpop.f32.mrf.mxu0
    %v333 = vadd.f32 %v104, %v332
    %334 = vmatmul.bf16.gmra.mxu0 %v79
    %v335 = vpop.f32.mrf.mxu0
    %v336 = vadd.f32 %v104, %v335
    %v337 = vpop.f32.mrf.mxu0
    %v338 = vadd.f32 %v104, %v337
    %339 = vmatmul.bf16.gmra.mxu0 %v80
    %v340 = vpop.f32.mrf.mxu0
    %v341 = vadd.f32 %v104, %v340
    %v342 = vpop.f32.mrf.mxu0
    %v343 = vadd.f32 %v104, %v342
    %344 = vmatmul.bf16.gmra.mxu0 %v81
    %v345 = vpop.f32.mrf.mxu0
    %v346 = vadd.f32 %v104, %v345
    %v347 = vpop.f32.mrf.mxu0
    %v348 = vadd.f32 %v104, %v347
    %349 = vmatmul.bf16.gmra.mxu0 %v82
    %v350 = vpop.f32.mrf.mxu0
    %v351 = vadd.f32 %v104, %v350
    %v352 = vpop.f32.mrf.mxu0
    %v353 = vadd.f32 %v104, %v352
    %354 = vmatmul.bf16.gmra.mxu0 %v83
    %v355 = vpop.f32.mrf.mxu0
    %v356 = vadd.f32 %v104, %v355
    %v357 = vpop.f32.mrf.mxu0
    %v358 = vadd.f32 %v104, %v357
    %359 = vmatmul.bf16.gmra.mxu0 %v84
    %v360 = vpop.f32.mrf.mxu0
    %v361 = vadd.f32 %v104, %v360
    %v362 = vpop.f32.mrf.mxu0
    %v363 = vadd.f32 %v104, %v362
    %364 = vdwg.mxu0
    %v365 = vmax.f32 %v286, 0.0
    %v366 = vmax.f32 %v288, 0.0
    %v367 = vmax.f32 %v291, 0.0
    %v368 = vmax.f32 %v293, 0.0
    %v369 = vmax.f32 %v296, 0.0
    %v370 = vmax.f32 %v298, 0.0
    %v371 = vmax.f32 %v301, 0.0
    %v372 = vmax.f32 %v303, 0.0
    %v373 = vmax.f32 %v306, 0.0
    %v374 = vmax.f32 %v308, 0.0
    %v375 = vmax.f32 %v311, 0.0
    %v376 = vmax.f32 %v313, 0.0
    %v377 = vmax.f32 %v316, 0.0
    %v378 = vmax.f32 %v318, 0.0
    %v379 = vmax.f32 %v321, 0.0
    %v380 = vmax.f32 %v323, 0.0
    %v381 = vmax.f32 %v326, 0.0
    %v382 = vmax.f32 %v328, 0.0
    %v383 = vmax.f32 %v331, 0.0
    %v384 = vmax.f32 %v333, 0.0
    %v385 = vmax.f32 %v336, 0.0
    %v386 = vmax.f32 %v338, 0.0
    %v387 = vmax.f32 %v341, 0.0
    %v388 = vmax.f32 %v343, 0.0
    %v389 = vmax.f32 %v346, 0.0
    %v390 = vmax.f32 %v348, 0.0
    %v391 = vmax.f32 %v351, 0.0
    %v392 = vmax.f32 %v353, 0.0
    %v393 = vmax.f32 %v356, 0.0
    %v394 = vmax.f32 %v358, 0.0
    %v395 = vmax.f32 %v361, 0.0
    %v396 = vmax.f32 %v363, 0.0
    %v397 = vpack.c.bf16 %v366, %v365
    %v398 = vpack.c.bf16 %v368, %v367
    %v399 = vpack.c.bf16 %v370, %v369
    %v400 = vpack.c.bf16 %v372, %v371
    %v401 = vpack.c.bf16 %v374, %v373
    %v402 = vpack.c.bf16 %v376, %v375
    %v403 = vpack.c.bf16 %v378, %v377
    %v404 = vpack.c.bf16 %v380, %v379
    %v405 = vpack.c.bf16 %v382, %v381
    %v406 = vpack.c.bf16 %v384, %v383
    %v407 = vpack.c.bf16 %v386, %v385
    %v408 = vpack.c.bf16 %v388, %v387
    %v409 = vpack.c.bf16 %v390, %v389
    %v410 = vpack.c.bf16 %v392, %v391
    %v411 = vpack.c.bf16 %v394, %v393
    %v412 = vpack.c.bf16 %v396, %v395
    %v413 = vld [vmem:[%s3] sm:$0xf]
    %v414 = vld [vmem:[%s3 + $0x4] sm:$0xf]
    %v415 = vld [vmem:[%s3 + $0x8] sm:$0xf]
    %v416 = vld [vmem:[%s3 + $0xc] sm:$0xf]
    %v417 = vld [vmem:[%s3 + $0x10] sm:$0xf]
    %v418 = vld [vmem:[%s3 + $0x14] sm:$0xf]
    %v419 = vld [vmem:[%s3 + $0x18] sm:$0xf]
    %v420 = vld [vmem:[%s3 + $0x1c] sm:$0xf]
    %v421 = vld [vmem:[%s3 + $0x20] sm:$0xf]
    %v422 = vld [vmem:[%s3 + $0x24] sm:$0xf]
    %v423 = vld [vmem:[%s3 + $0x28] sm:$0xf]
    %v424 = vld [vmem:[%s3 + $0x2c] sm:$0xf]
    %v425 = vld [vmem:[%s3 + $0x30] sm:$0xf]
    %v426 = vld [vmem:[%s3 + $0x34] sm:$0xf]
    %v427 = vld [vmem:[%s3 + $0x38] sm:$0xf]
    %v428 = vld [vmem:[%s3 + $0x3c] sm:$0xf]
    %v429 = vld [vmem:[%s4] sm:$0x1]
    %v431 = vperm.slane %v429, 0
    %v449 = vunpack.c.l.b16 %v413
    %v450 = vunpack.c.l.b16 %v414
    %v451 = vunpack.c.l.b16 %v415
    %v452 = vunpack.c.l.b16 %v416
    %v453 = vunpack.c.l.b16 %v417
    %v454 = vunpack.c.l.b16 %v418
    %v455 = vunpack.c.l.b16 %v419
    %v456 = vunpack.c.l.b16 %v420
    %v457 = vunpack.c.l.b16 %v421
    %v458 = vunpack.c.l.b16 %v422
    %v459 = vunpack.c.l.b16 %v423
    %v460 = vunpack.c.l.b16 %v424
    %v461 = vunpack.c.l.b16 %v425
    %v462 = vunpack.c.l.b16 %v426
    %v463 = vunpack.c.l.b16 %v427
    %v464 = vunpack.c.l.b16 %v428
    %v465 = vpack.c.b16 %v450, %v449
    %v466 = vpack.c.b16 %v452, %v451
    %v467 = vpack.c.b16 %v454, %v453
    %v468 = vpack.c.b16 %v456, %v455
    %v469 = vpack.c.b16 %v458, %v457
    %v470 = vpack.c.b16 %v460, %v459
    %v471 = vpack.c.b16 %v462, %v461
    %v472 = vpack.c.b16 %v464, %v463
    %481 = vmatpush.bf16.msra.mxu0 %v472
    %482 = vmatpush.bf16.msra.mxu0 %v471
    %483 = vmatpush.bf16.msra.mxu0 %v470
    %484 = vmatpush.bf16.msra.mxu0 %v469
    %485 = vmatpush.bf16.msra.mxu0 %v468
    %486 = vmatpush.bf16.msra.mxu0 %v467
    %487 = vmatpush.bf16.msra.mxu0 %v466
    %488 = vmatpush.bf16.msra.mxu0 %v465
    %489 = vmatmul.bf16.gmra.mxu0 %v397
    %v490 = vpop.f32.mrf.mxu0
    %v491 = vadd.f32 %v431, %v490
    %v492 = vpop.f32.mrf.mxu0
    %v493 = vadd.f32 %v431, %v492
    %494 = vmatmul.bf16.gmra.mxu0 %v398
    %v495 = vpop.f32.mrf.mxu0
    %v496 = vadd.f32 %v431, %v495
    %v497 = vpop.f32.mrf.mxu0
    %v498 = vadd.f32 %v431, %v497
    %499 = vmatmul.bf16.gmra.mxu0 %v399
    %v500 = vpop.f32.mrf.mxu0
    %v501 = vadd.f32 %v431, %v500
    %v502 = vpop.f32.mrf.mxu0
    %v503 = vadd.f32 %v431, %v502
    %504 = vmatmul.bf16.gmra.mxu0 %v400
    %v505 = vpop.f32.mrf.mxu0
    %v506 = vadd.f32 %v431, %v505
    %v507 = vpop.f32.mrf.mxu0
    %v508 = vadd.f32 %v431, %v507
    %509 = vmatmul.bf16.gmra.mxu0 %v401
    %v510 = vpop.f32.mrf.mxu0
    %v511 = vadd.f32 %v431, %v510
    %v512 = vpop.f32.mrf.mxu0
    %v513 = vadd.f32 %v431, %v512
    %514 = vmatmul.bf16.gmra.mxu0 %v402
    %v515 = vpop.f32.mrf.mxu0
    %v516 = vadd.f32 %v431, %v515
    %v517 = vpop.f32.mrf.mxu0
    %v518 = vadd.f32 %v431, %v517
    %519 = vmatmul.bf16.gmra.mxu0 %v403
    %v520 = vpop.f32.mrf.mxu0
    %v521 = vadd.f32 %v431, %v520
    %v522 = vpop.f32.mrf.mxu0
    %v523 = vadd.f32 %v431, %v522
    %524 = vmatmul.bf16.gmra.mxu0 %v404
    %v525 = vpop.f32.mrf.mxu0
    %v526 = vadd.f32 %v431, %v525
    %v527 = vpop.f32.mrf.mxu0
    %v528 = vadd.f32 %v431, %v527
    %529 = vmatmul.bf16.gmra.mxu0 %v405
    %v530 = vpop.f32.mrf.mxu0
    %v531 = vadd.f32 %v431, %v530
    %v532 = vpop.f32.mrf.mxu0
    %v533 = vadd.f32 %v431, %v532
    %534 = vmatmul.bf16.gmra.mxu0 %v406
    %v535 = vpop.f32.mrf.mxu0
    %v536 = vadd.f32 %v431, %v535
    %v537 = vpop.f32.mrf.mxu0
    %v538 = vadd.f32 %v431, %v537
    %539 = vmatmul.bf16.gmra.mxu0 %v407
    %v540 = vpop.f32.mrf.mxu0
    %v541 = vadd.f32 %v431, %v540
    %v542 = vpop.f32.mrf.mxu0
    %v543 = vadd.f32 %v431, %v542
    %544 = vmatmul.bf16.gmra.mxu0 %v408
    %v545 = vpop.f32.mrf.mxu0
    %v546 = vadd.f32 %v431, %v545
    %v547 = vpop.f32.mrf.mxu0
    %v548 = vadd.f32 %v431, %v547
    %549 = vmatmul.bf16.gmra.mxu0 %v409
    %v550 = vpop.f32.mrf.mxu0
    %v551 = vadd.f32 %v431, %v550
    %v552 = vpop.f32.mrf.mxu0
    %v553 = vadd.f32 %v431, %v552
    %554 = vmatmul.bf16.gmra.mxu0 %v410
    %v555 = vpop.f32.mrf.mxu0
    %v556 = vadd.f32 %v431, %v555
    %v557 = vpop.f32.mrf.mxu0
    %v558 = vadd.f32 %v431, %v557
    %559 = vmatmul.bf16.gmra.mxu0 %v411
    %v560 = vpop.f32.mrf.mxu0
    %v561 = vadd.f32 %v431, %v560
    %v562 = vpop.f32.mrf.mxu0
    %v563 = vadd.f32 %v431, %v562
    %564 = vmatmul.bf16.gmra.mxu0 %v412
    %v565 = vpop.f32.mrf.mxu0
    %v566 = vadd.f32 %v431, %v565
    %v567 = vpop.f32.mrf.mxu0
    %v568 = vadd.f32 %v431, %v567
    %569 = vdwg.mxu0
    %v570 = vxor.u32 %v491, 2147483648
    %v571 = vxor.u32 %v493, 2147483648
    %v572 = vxor.u32 %v496, 2147483648
    %v573 = vxor.u32 %v498, 2147483648
    %v574 = vxor.u32 %v501, 2147483648
    %v575 = vxor.u32 %v503, 2147483648
    %v576 = vxor.u32 %v506, 2147483648
    %v577 = vxor.u32 %v508, 2147483648
    %v578 = vxor.u32 %v511, 2147483648
    %v579 = vxor.u32 %v513, 2147483648
    %v580 = vxor.u32 %v516, 2147483648
    %v581 = vxor.u32 %v518, 2147483648
    %v582 = vxor.u32 %v521, 2147483648
    %v583 = vxor.u32 %v523, 2147483648
    %v584 = vxor.u32 %v526, 2147483648
    %v585 = vxor.u32 %v528, 2147483648
    %v586 = vxor.u32 %v531, 2147483648
    %v587 = vxor.u32 %v533, 2147483648
    %v588 = vxor.u32 %v536, 2147483648
    %v589 = vxor.u32 %v538, 2147483648
    %v590 = vxor.u32 %v541, 2147483648
    %v591 = vxor.u32 %v543, 2147483648
    %v592 = vxor.u32 %v546, 2147483648
    %v593 = vxor.u32 %v548, 2147483648
    %v594 = vxor.u32 %v551, 2147483648
    %v595 = vxor.u32 %v553, 2147483648
    %v596 = vxor.u32 %v556, 2147483648
    %v597 = vxor.u32 %v558, 2147483648
    %v598 = vxor.u32 %v561, 2147483648
    %v599 = vxor.u32 %v563, 2147483648
    %v600 = vxor.u32 %v566, 2147483648
    %v601 = vxor.u32 %v568, 2147483648
    %v602 = vmul.f32 %v570, 1.442695
    %v603 = vpow.pop %v602
    %v604 = vmul.f32 %v571, 1.442695
    %v605 = vpow.pop %v604
    %v606 = vmul.f32 %v572, 1.442695
    %v607 = vpow.pop %v606
    %v608 = vmul.f32 %v573, 1.442695
    %v609 = vpow.pop %v608
    %v610 = vmul.f32 %v574, 1.442695
    %v611 = vpow.pop %v610
    %v612 = vmul.f32 %v575, 1.442695
    %v613 = vpow.pop %v612
    %v614 = vmul.f32 %v576, 1.442695
    %v615 = vpow.pop %v614
    %v616 = vmul.f32 %v577, 1.442695
    %v617 = vpow.pop %v616
    %v618 = vmul.f32 %v578, 1.442695
    %v619 = vpow.pop %v618
    %v620 = vmul.f32 %v579, 1.442695
    %v621 = vpow.pop %v620
    %v622 = vmul.f32 %v580, 1.442695
    %v623 = vpow.pop %v622
    %v624 = vmul.f32 %v581, 1.442695
    %v625 = vpow.pop %v624
    %v626 = vmul.f32 %v582, 1.442695
    %v627 = vpow.pop %v626
    %v628 = vmul.f32 %v583, 1.442695
    %v629 = vpow.pop %v628
    %v630 = vmul.f32 %v584, 1.442695
    %v631 = vpow.pop %v630
    %v632 = vmul.f32 %v585, 1.442695
    %v633 = vpow.pop %v632
    %v634 = vmul.f32 %v586, 1.442695
    %v635 = vpow.pop %v634
    %v636 = vmul.f32 %v587, 1.442695
    %v637 = vpow.pop %v636
    %v638 = vmul.f32 %v588, 1.442695
    %v639 = vpow.pop %v638
    %v640 = vmul.f32 %v589, 1.442695
    %v641 = vpow.pop %v640
    %v642 = vmul.f32 %v590, 1.442695
    %v643 = vpow.pop %v642
    %v644 = vmul.f32 %v591, 1.442695
    %v645 = vpow.pop %v644
    %v646 = vmul.f32 %v592, 1.442695
    %v647 = vpow.pop %v646
    %v648 = vmul.f32 %v593, 1.442695
    %v649 = vpow.pop %v648
    %v650 = vmul.f32 %v594, 1.442695
    %v651 = vpow.pop %v650
    %v652 = vmul.f32 %v595, 1.442695
    %v653 = vpow.pop %v652
    %v654 = vmul.f32 %v596, 1.442695
    %v655 = vpow.pop %v654
    %v656 = vmul.f32 %v597, 1.442695
    %v657 = vpow.pop %v656
    %v658 = vmul.f32 %v598, 1.442695
    %v659 = vpow.pop %v658
    %v660 = vmul.f32 %v599, 1.442695
    %v661 = vpow.pop %v660
    %v662 = vmul.f32 %v600, 1.442695
    %v663 = vpow.pop %v662
    %v664 = vmul.f32 %v601, 1.442695
    %v665 = vpow.pop %v664
    %v666 = vadd.f32 %v603, 1.0
    %v667 = vadd.f32 %v605, 1.0
    %v668 = vadd.f32 %v607, 1.0
    %v669 = vadd.f32 %v609, 1.0
    %v670 = vadd.f32 %v611, 1.0
    %v671 = vadd.f32 %v613, 1.0
    %v672 = vadd.f32 %v615, 1.0
    %v673 = vadd.f32 %v617, 1.0
    %v674 = vadd.f32 %v619, 1.0
    %v675 = vadd.f32 %v621, 1.0
    %v676 = vadd.f32 %v623, 1.0
    %v677 = vadd.f32 %v625, 1.0
    %v678 = vadd.f32 %v627, 1.0
    %v679 = vadd.f32 %v629, 1.0
    %v680 = vadd.f32 %v631, 1.0
    %v681 = vadd.f32 %v633, 1.0
    %v682 = vadd.f32 %v635, 1.0
    %v683 = vadd.f32 %v637, 1.0
    %v684 = vadd.f32 %v639, 1.0
    %v685 = vadd.f32 %v641, 1.0
    %v686 = vadd.f32 %v643, 1.0
    %v687 = vadd.f32 %v645, 1.0
    %v688 = vadd.f32 %v647, 1.0
    %v689 = vadd.f32 %v649, 1.0
    %v690 = vadd.f32 %v651, 1.0
    %v691 = vadd.f32 %v653, 1.0
    %v692 = vadd.f32 %v655, 1.0
    %v693 = vadd.f32 %v657, 1.0
    %v694 = vadd.f32 %v659, 1.0
    %v695 = vadd.f32 %v661, 1.0
    %v696 = vadd.f32 %v663, 1.0
    %v697 = vadd.f32 %v665, 1.0
    %v698 = vrcp.pop %v666
    %v699 = vmul.f32 %v666, %v698
    %v700 = vsub.f32 1.0, %v699
    %v701 = vmul.f32 %v698, %v700
    %v702 = vadd.f32 %v698, %v701
    %vm703 = vweird.f32 %v666
    %vm704 = vweird.f32 %v698
    %vm705 = vmor %vm703, %vm704
    %v706 = vsel %vm705, %v698, %v702
    %v707 = vand.u32 2147483647, %v666
    %vm708 = vcmp.eq.f32.partialorder %v707, 8.507059e+37
    %v709 = vand.u32 %v666, 2147483648
    %v710 = vor.u32 1.1754944e-38, %v709
    %v711 = vsel %vm708, %v710, %v706
    %v712 = vmul.f32 1.0, %v711
    %v713 = vrcp.pop %v667
    %v714 = vmul.f32 %v667, %v713
    %v715 = vsub.f32 1.0, %v714
    %v716 = vmul.f32 %v713, %v715
    %v717 = vadd.f32 %v713, %v716
    %vm718 = vweird.f32 %v667
    %vm719 = vweird.f32 %v713
    %vm720 = vmor %vm718, %vm719
    %v721 = vsel %vm720, %v713, %v717
    %v722 = vand.u32 2147483647, %v667
    %vm723 = vcmp.eq.f32.partialorder %v722, 8.507059e+37
    %v724 = vand.u32 %v667, 2147483648
    %v725 = vor.u32 1.1754944e-38, %v724
    %v726 = vsel %vm723, %v725, %v721
    %v727 = vmul.f32 1.0, %v726
    %v728 = vrcp.pop %v668
    %v729 = vmul.f32 %v668, %v728
    %v730 = vsub.f32 1.0, %v729
    %v731 = vmul.f32 %v728, %v730
    %v732 = vadd.f32 %v728, %v731
    %vm733 = vweird.f32 %v668
    %vm734 = vweird.f32 %v728
    %vm735 = vmor %vm733, %vm734
    %v736 = vsel %vm735, %v728, %v732
    %v737 = vand.u32 2147483647, %v668
    %vm738 = vcmp.eq.f32.partialorder %v737, 8.507059e+37
    %v739 = vand.u32 %v668, 2147483648
    %v740 = vor.u32 1.1754944e-38, %v739
    %v741 = vsel %vm738, %v740, %v736
    %v742 = vmul.f32 1.0, %v741
    %v743 = vrcp.pop %v669
    %v744 = vmul.f32 %v669, %v743
    %v745 = vsub.f32 1.0, %v744
    %v746 = vmul.f32 %v743, %v745
    %v747 = vadd.f32 %v743, %v746
    %vm748 = vweird.f32 %v669
    %vm749 = vweird.f32 %v743
    %vm750 = vmor %vm748, %vm749
    %v751 = vsel %vm750, %v743, %v747
    %v752 = vand.u32 2147483647, %v669
    %vm753 = vcmp.eq.f32.partialorder %v752, 8.507059e+37
    %v754 = vand.u32 %v669, 2147483648
    %v755 = vor.u32 1.1754944e-38, %v754
    %v756 = vsel %vm753, %v755, %v751
    %v757 = vmul.f32 1.0, %v756
    %v758 = vrcp.pop %v670
    %v759 = vmul.f32 %v670, %v758
    %v760 = vsub.f32 1.0, %v759
    %v761 = vmul.f32 %v758, %v760
    %v762 = vadd.f32 %v758, %v761
    %vm763 = vweird.f32 %v670
    %vm764 = vweird.f32 %v758
    %vm765 = vmor %vm763, %vm764
    %v766 = vsel %vm765, %v758, %v762
    %v767 = vand.u32 2147483647, %v670
    %vm768 = vcmp.eq.f32.partialorder %v767, 8.507059e+37
    %v769 = vand.u32 %v670, 2147483648
    %v770 = vor.u32 1.1754944e-38, %v769
    %v771 = vsel %vm768, %v770, %v766
    %v772 = vmul.f32 1.0, %v771
    %v773 = vrcp.pop %v671
    %v774 = vmul.f32 %v671, %v773
    %v775 = vsub.f32 1.0, %v774
    %v776 = vmul.f32 %v773, %v775
    %v777 = vadd.f32 %v773, %v776
    %vm778 = vweird.f32 %v671
    %vm779 = vweird.f32 %v773
    %vm780 = vmor %vm778, %vm779
    %v781 = vsel %vm780, %v773, %v777
    %v782 = vand.u32 2147483647, %v671
    %vm783 = vcmp.eq.f32.partialorder %v782, 8.507059e+37
    %v784 = vand.u32 %v671, 2147483648
    %v785 = vor.u32 1.1754944e-38, %v784
    %v786 = vsel %vm783, %v785, %v781
    %v787 = vmul.f32 1.0, %v786
    %v788 = vrcp.pop %v672
    %v789 = vmul.f32 %v672, %v788
    %v790 = vsub.f32 1.0, %v789
    %v791 = vmul.f32 %v788, %v790
    %v792 = vadd.f32 %v788, %v791
    %vm793 = vweird.f32 %v672
    %vm794 = vweird.f32 %v788
    %vm795 = vmor %vm793, %vm794
    %v796 = vsel %vm795, %v788, %v792
    %v797 = vand.u32 2147483647, %v672
    %vm798 = vcmp.eq.f32.partialorder %v797, 8.507059e+37
    %v799 = vand.u32 %v672, 2147483648
    %v800 = vor.u32 1.1754944e-38, %v799
    %v801 = vsel %vm798, %v800, %v796
    %v802 = vmul.f32 1.0, %v801
    %v803 = vrcp.pop %v673
    %v804 = vmul.f32 %v673, %v803
    %v805 = vsub.f32 1.0, %v804
    %v806 = vmul.f32 %v803, %v805
    %v807 = vadd.f32 %v803, %v806
    %vm808 = vweird.f32 %v673
    %vm809 = vweird.f32 %v803
    %vm810 = vmor %vm808, %vm809
    %v811 = vsel %vm810, %v803, %v807
    %v812 = vand.u32 2147483647, %v673
    %vm813 = vcmp.eq.f32.partialorder %v812, 8.507059e+37
    %v814 = vand.u32 %v673, 2147483648
    %v815 = vor.u32 1.1754944e-38, %v814
    %v816 = vsel %vm813, %v815, %v811
    %v817 = vmul.f32 1.0, %v816
    %v818 = vrcp.pop %v674
    %v819 = vmul.f32 %v674, %v818
    %v820 = vsub.f32 1.0, %v819
    %v821 = vmul.f32 %v818, %v820
    %v822 = vadd.f32 %v818, %v821
    %vm823 = vweird.f32 %v674
    %vm824 = vweird.f32 %v818
    %vm825 = vmor %vm823, %vm824
    %v826 = vsel %vm825, %v818, %v822
    %v827 = vand.u32 2147483647, %v674
    %vm828 = vcmp.eq.f32.partialorder %v827, 8.507059e+37
    %v829 = vand.u32 %v674, 2147483648
    %v830 = vor.u32 1.1754944e-38, %v829
    %v831 = vsel %vm828, %v830, %v826
    %v832 = vmul.f32 1.0, %v831
    %v833 = vrcp.pop %v675
    %v834 = vmul.f32 %v675, %v833
    %v835 = vsub.f32 1.0, %v834
    %v836 = vmul.f32 %v833, %v835
    %v837 = vadd.f32 %v833, %v836
    %vm838 = vweird.f32 %v675
    %vm839 = vweird.f32 %v833
    %vm840 = vmor %vm838, %vm839
    %v841 = vsel %vm840, %v833, %v837
    %v842 = vand.u32 2147483647, %v675
    %vm843 = vcmp.eq.f32.partialorder %v842, 8.507059e+37
    %v844 = vand.u32 %v675, 2147483648
    %v845 = vor.u32 1.1754944e-38, %v844
    %v846 = vsel %vm843, %v845, %v841
    %v847 = vmul.f32 1.0, %v846
    %v848 = vrcp.pop %v676
    %v849 = vmul.f32 %v676, %v848
    %v850 = vsub.f32 1.0, %v849
    %v851 = vmul.f32 %v848, %v850
    %v852 = vadd.f32 %v848, %v851
    %vm853 = vweird.f32 %v676
    %vm854 = vweird.f32 %v848
    %vm855 = vmor %vm853, %vm854
    %v856 = vsel %vm855, %v848, %v852
    %v857 = vand.u32 2147483647, %v676
    %vm858 = vcmp.eq.f32.partialorder %v857, 8.507059e+37
    %v859 = vand.u32 %v676, 2147483648
    %v860 = vor.u32 1.1754944e-38, %v859
    %v861 = vsel %vm858, %v860, %v856
    %v862 = vmul.f32 1.0, %v861
    %v863 = vrcp.pop %v677
    %v864 = vmul.f32 %v677, %v863
    %v865 = vsub.f32 1.0, %v864
    %v866 = vmul.f32 %v863, %v865
    %v867 = vadd.f32 %v863, %v866
    %vm868 = vweird.f32 %v677
    %vm869 = vweird.f32 %v863
    %vm870 = vmor %vm868, %vm869
    %v871 = vsel %vm870, %v863, %v867
    %v872 = vand.u32 2147483647, %v677
    %vm873 = vcmp.eq.f32.partialorder %v872, 8.507059e+37
    %v874 = vand.u32 %v677, 2147483648
    %v875 = vor.u32 1.1754944e-38, %v874
    %v876 = vsel %vm873, %v875, %v871
    %v877 = vmul.f32 1.0, %v876
    %v878 = vrcp.pop %v678
    %v879 = vmul.f32 %v678, %v878
    %v880 = vsub.f32 1.0, %v879
    %v881 = vmul.f32 %v878, %v880
    %v882 = vadd.f32 %v878, %v881
    %vm883 = vweird.f32 %v678
    %vm884 = vweird.f32 %v878
    %vm885 = vmor %vm883, %vm884
    %v886 = vsel %vm885, %v878, %v882
    %v887 = vand.u32 2147483647, %v678
    %vm888 = vcmp.eq.f32.partialorder %v887, 8.507059e+37
    %v889 = vand.u32 %v678, 2147483648
    %v890 = vor.u32 1.1754944e-38, %v889
    %v891 = vsel %vm888, %v890, %v886
    %v892 = vmul.f32 1.0, %v891
    %v893 = vrcp.pop %v679
    %v894 = vmul.f32 %v679, %v893
    %v895 = vsub.f32 1.0, %v894
    %v896 = vmul.f32 %v893, %v895
    %v897 = vadd.f32 %v893, %v896
    %vm898 = vweird.f32 %v679
    %vm899 = vweird.f32 %v893
    %vm900 = vmor %vm898, %vm899
    %v901 = vsel %vm900, %v893, %v897
    %v902 = vand.u32 2147483647, %v679
    %vm903 = vcmp.eq.f32.partialorder %v902, 8.507059e+37
    %v904 = vand.u32 %v679, 2147483648
    %v905 = vor.u32 1.1754944e-38, %v904
    %v906 = vsel %vm903, %v905, %v901
    %v907 = vmul.f32 1.0, %v906
    %v908 = vrcp.pop %v680
    %v909 = vmul.f32 %v680, %v908
    %v910 = vsub.f32 1.0, %v909
    %v911 = vmul.f32 %v908, %v910
    %v912 = vadd.f32 %v908, %v911
    %vm913 = vweird.f32 %v680
    %vm914 = vweird.f32 %v908
    %vm915 = vmor %vm913, %vm914
    %v916 = vsel %vm915, %v908, %v912
    %v917 = vand.u32 2147483647, %v680
    %vm918 = vcmp.eq.f32.partialorder %v917, 8.507059e+37
    %v919 = vand.u32 %v680, 2147483648
    %v920 = vor.u32 1.1754944e-38, %v919
    %v921 = vsel %vm918, %v920, %v916
    %v922 = vmul.f32 1.0, %v921
    %v923 = vrcp.pop %v681
    %v924 = vmul.f32 %v681, %v923
    %v925 = vsub.f32 1.0, %v924
    %v926 = vmul.f32 %v923, %v925
    %v927 = vadd.f32 %v923, %v926
    %vm928 = vweird.f32 %v681
    %vm929 = vweird.f32 %v923
    %vm930 = vmor %vm928, %vm929
    %v931 = vsel %vm930, %v923, %v927
    %v932 = vand.u32 2147483647, %v681
    %vm933 = vcmp.eq.f32.partialorder %v932, 8.507059e+37
    %v934 = vand.u32 %v681, 2147483648
    %v935 = vor.u32 1.1754944e-38, %v934
    %v936 = vsel %vm933, %v935, %v931
    %v937 = vmul.f32 1.0, %v936
    %v938 = vrcp.pop %v682
    %v939 = vmul.f32 %v682, %v938
    %v940 = vsub.f32 1.0, %v939
    %v941 = vmul.f32 %v938, %v940
    %v942 = vadd.f32 %v938, %v941
    %vm943 = vweird.f32 %v682
    %vm944 = vweird.f32 %v938
    %vm945 = vmor %vm943, %vm944
    %v946 = vsel %vm945, %v938, %v942
    %v947 = vand.u32 2147483647, %v682
    %vm948 = vcmp.eq.f32.partialorder %v947, 8.507059e+37
    %v949 = vand.u32 %v682, 2147483648
    %v950 = vor.u32 1.1754944e-38, %v949
    %v951 = vsel %vm948, %v950, %v946
    %v952 = vmul.f32 1.0, %v951
    %v953 = vrcp.pop %v683
    %v954 = vmul.f32 %v683, %v953
    %v955 = vsub.f32 1.0, %v954
    %v956 = vmul.f32 %v953, %v955
    %v957 = vadd.f32 %v953, %v956
    %vm958 = vweird.f32 %v683
    %vm959 = vweird.f32 %v953
    %vm960 = vmor %vm958, %vm959
    %v961 = vsel %vm960, %v953, %v957
    %v962 = vand.u32 2147483647, %v683
    %vm963 = vcmp.eq.f32.partialorder %v962, 8.507059e+37
    %v964 = vand.u32 %v683, 2147483648
    %v965 = vor.u32 1.1754944e-38, %v964
    %v966 = vsel %vm963, %v965, %v961
    %v967 = vmul.f32 1.0, %v966
    %v968 = vrcp.pop %v684
    %v969 = vmul.f32 %v684, %v968
    %v970 = vsub.f32 1.0, %v969
    %v971 = vmul.f32 %v968, %v970
    %v972 = vadd.f32 %v968, %v971
    %vm973 = vweird.f32 %v684
    %vm974 = vweird.f32 %v968
    %vm975 = vmor %vm973, %vm974
    %v976 = vsel %vm975, %v968, %v972
    %v977 = vand.u32 2147483647, %v684
    %vm978 = vcmp.eq.f32.partialorder %v977, 8.507059e+37
    %v979 = vand.u32 %v684, 2147483648
    %v980 = vor.u32 1.1754944e-38, %v979
    %v981 = vsel %vm978, %v980, %v976
    %v982 = vmul.f32 1.0, %v981
    %v983 = vrcp.pop %v685
    %v984 = vmul.f32 %v685, %v983
    %v985 = vsub.f32 1.0, %v984
    %v986 = vmul.f32 %v983, %v985
    %v987 = vadd.f32 %v983, %v986
    %vm988 = vweird.f32 %v685
    %vm989 = vweird.f32 %v983
    %vm990 = vmor %vm988, %vm989
    %v991 = vsel %vm990, %v983, %v987
    %v992 = vand.u32 2147483647, %v685
    %vm993 = vcmp.eq.f32.partialorder %v992, 8.507059e+37
    %v994 = vand.u32 %v685, 2147483648
    %v995 = vor.u32 1.1754944e-38, %v994
    %v996 = vsel %vm993, %v995, %v991
    %v997 = vmul.f32 1.0, %v996
    %v998 = vrcp.pop %v686
    %v999 = vmul.f32 %v686, %v998
    %v1000 = vsub.f32 1.0, %v999
    %v1001 = vmul.f32 %v998, %v1000
    %v1002 = vadd.f32 %v998, %v1001
    %vm1003 = vweird.f32 %v686
    %vm1004 = vweird.f32 %v998
    %vm1005 = vmor %vm1003, %vm1004
    %v1006 = vsel %vm1005, %v998, %v1002
    %v1007 = vand.u32 2147483647, %v686
    %vm1008 = vcmp.eq.f32.partialorder %v1007, 8.507059e+37
    %v1009 = vand.u32 %v686, 2147483648
    %v1010 = vor.u32 1.1754944e-38, %v1009
    %v1011 = vsel %vm1008, %v1010, %v1006
    %v1012 = vmul.f32 1.0, %v1011
    %v1013 = vrcp.pop %v687
    %v1014 = vmul.f32 %v687, %v1013
    %v1015 = vsub.f32 1.0, %v1014
    %v1016 = vmul.f32 %v1013, %v1015
    %v1017 = vadd.f32 %v1013, %v1016
    %vm1018 = vweird.f32 %v687
    %vm1019 = vweird.f32 %v1013
    %vm1020 = vmor %vm1018, %vm1019
    %v1021 = vsel %vm1020, %v1013, %v1017
    %v1022 = vand.u32 2147483647, %v687
    %vm1023 = vcmp.eq.f32.partialorder %v1022, 8.507059e+37
    %v1024 = vand.u32 %v687, 2147483648
    %v1025 = vor.u32 1.1754944e-38, %v1024
    %v1026 = vsel %vm1023, %v1025, %v1021
    %v1027 = vmul.f32 1.0, %v1026
    %v1028 = vrcp.pop %v688
    %v1029 = vmul.f32 %v688, %v1028
    %v1030 = vsub.f32 1.0, %v1029
    %v1031 = vmul.f32 %v1028, %v1030
    %v1032 = vadd.f32 %v1028, %v1031
    %vm1033 = vweird.f32 %v688
    %vm1034 = vweird.f32 %v1028
    %vm1035 = vmor %vm1033, %vm1034
    %v1036 = vsel %vm1035, %v1028, %v1032
    %v1037 = vand.u32 2147483647, %v688
    %vm1038 = vcmp.eq.f32.partialorder %v1037, 8.507059e+37
    %v1039 = vand.u32 %v688, 2147483648
    %v1040 = vor.u32 1.1754944e-38, %v1039
    %v1041 = vsel %vm1038, %v1040, %v1036
    %v1042 = vmul.f32 1.0, %v1041
    %v1043 = vrcp.pop %v689
    %v1044 = vmul.f32 %v689, %v1043
    %v1045 = vsub.f32 1.0, %v1044
    %v1046 = vmul.f32 %v1043, %v1045
    %v1047 = vadd.f32 %v1043, %v1046
    %vm1048 = vweird.f32 %v689
    %vm1049 = vweird.f32 %v1043
    %vm1050 = vmor %vm1048, %vm1049
    %v1051 = vsel %vm1050, %v1043, %v1047
    %v1052 = vand.u32 2147483647, %v689
    %vm1053 = vcmp.eq.f32.partialorder %v1052, 8.507059e+37
    %v1054 = vand.u32 %v689, 2147483648
    %v1055 = vor.u32 1.1754944e-38, %v1054
    %v1056 = vsel %vm1053, %v1055, %v1051
    %v1057 = vmul.f32 1.0, %v1056
    %v1058 = vrcp.pop %v690
    %v1059 = vmul.f32 %v690, %v1058
    %v1060 = vsub.f32 1.0, %v1059
    %v1061 = vmul.f32 %v1058, %v1060
    %v1062 = vadd.f32 %v1058, %v1061
    %vm1063 = vweird.f32 %v690
    %vm1064 = vweird.f32 %v1058
    %vm1065 = vmor %vm1063, %vm1064
    %v1066 = vsel %vm1065, %v1058, %v1062
    %v1067 = vand.u32 2147483647, %v690
    %vm1068 = vcmp.eq.f32.partialorder %v1067, 8.507059e+37
    %v1069 = vand.u32 %v690, 2147483648
    %v1070 = vor.u32 1.1754944e-38, %v1069
    %v1071 = vsel %vm1068, %v1070, %v1066
    %v1072 = vmul.f32 1.0, %v1071
    %v1073 = vrcp.pop %v691
    %v1074 = vmul.f32 %v691, %v1073
    %v1075 = vsub.f32 1.0, %v1074
    %v1076 = vmul.f32 %v1073, %v1075
    %v1077 = vadd.f32 %v1073, %v1076
    %vm1078 = vweird.f32 %v691
    %vm1079 = vweird.f32 %v1073
    %vm1080 = vmor %vm1078, %vm1079
    %v1081 = vsel %vm1080, %v1073, %v1077
    %v1082 = vand.u32 2147483647, %v691
    %vm1083 = vcmp.eq.f32.partialorder %v1082, 8.507059e+37
    %v1084 = vand.u32 %v691, 2147483648
    %v1085 = vor.u32 1.1754944e-38, %v1084
    %v1086 = vsel %vm1083, %v1085, %v1081
    %v1087 = vmul.f32 1.0, %v1086
    %v1088 = vrcp.pop %v692
    %v1089 = vmul.f32 %v692, %v1088
    %v1090 = vsub.f32 1.0, %v1089
    %v1091 = vmul.f32 %v1088, %v1090
    %v1092 = vadd.f32 %v1088, %v1091
    %vm1093 = vweird.f32 %v692
    %vm1094 = vweird.f32 %v1088
    %vm1095 = vmor %vm1093, %vm1094
    %v1096 = vsel %vm1095, %v1088, %v1092
    %v1097 = vand.u32 2147483647, %v692
    %vm1098 = vcmp.eq.f32.partialorder %v1097, 8.507059e+37
    %v1099 = vand.u32 %v692, 2147483648
    %v1100 = vor.u32 1.1754944e-38, %v1099
    %v1101 = vsel %vm1098, %v1100, %v1096
    %v1102 = vmul.f32 1.0, %v1101
    %v1103 = vrcp.pop %v693
    %v1104 = vmul.f32 %v693, %v1103
    %v1105 = vsub.f32 1.0, %v1104
    %v1106 = vmul.f32 %v1103, %v1105
    %v1107 = vadd.f32 %v1103, %v1106
    %vm1108 = vweird.f32 %v693
    %vm1109 = vweird.f32 %v1103
    %vm1110 = vmor %vm1108, %vm1109
    %v1111 = vsel %vm1110, %v1103, %v1107
    %v1112 = vand.u32 2147483647, %v693
    %vm1113 = vcmp.eq.f32.partialorder %v1112, 8.507059e+37
    %v1114 = vand.u32 %v693, 2147483648
    %v1115 = vor.u32 1.1754944e-38, %v1114
    %v1116 = vsel %vm1113, %v1115, %v1111
    %v1117 = vmul.f32 1.0, %v1116
    %v1118 = vrcp.pop %v694
    %v1119 = vmul.f32 %v694, %v1118
    %v1120 = vsub.f32 1.0, %v1119
    %v1121 = vmul.f32 %v1118, %v1120
    %v1122 = vadd.f32 %v1118, %v1121
    %vm1123 = vweird.f32 %v694
    %vm1124 = vweird.f32 %v1118
    %vm1125 = vmor %vm1123, %vm1124
    %v1126 = vsel %vm1125, %v1118, %v1122
    %v1127 = vand.u32 2147483647, %v694
    %vm1128 = vcmp.eq.f32.partialorder %v1127, 8.507059e+37
    %v1129 = vand.u32 %v694, 2147483648
    %v1130 = vor.u32 1.1754944e-38, %v1129
    %v1131 = vsel %vm1128, %v1130, %v1126
    %v1132 = vmul.f32 1.0, %v1131
    %v1133 = vrcp.pop %v695
    %v1134 = vmul.f32 %v695, %v1133
    %v1135 = vsub.f32 1.0, %v1134
    %v1136 = vmul.f32 %v1133, %v1135
    %v1137 = vadd.f32 %v1133, %v1136
    %vm1138 = vweird.f32 %v695
    %vm1139 = vweird.f32 %v1133
    %vm1140 = vmor %vm1138, %vm1139
    %v1141 = vsel %vm1140, %v1133, %v1137
    %v1142 = vand.u32 2147483647, %v695
    %vm1143 = vcmp.eq.f32.partialorder %v1142, 8.507059e+37
    %v1144 = vand.u32 %v695, 2147483648
    %v1145 = vor.u32 1.1754944e-38, %v1144
    %v1146 = vsel %vm1143, %v1145, %v1141
    %v1147 = vmul.f32 1.0, %v1146
    %v1148 = vrcp.pop %v696
    %v1149 = vmul.f32 %v696, %v1148
    %v1150 = vsub.f32 1.0, %v1149
    %v1151 = vmul.f32 %v1148, %v1150
    %v1152 = vadd.f32 %v1148, %v1151
    %vm1153 = vweird.f32 %v696
    %vm1154 = vweird.f32 %v1148
    %vm1155 = vmor %vm1153, %vm1154
    %v1156 = vsel %vm1155, %v1148, %v1152
    %v1157 = vand.u32 2147483647, %v696
    %vm1158 = vcmp.eq.f32.partialorder %v1157, 8.507059e+37
    %v1159 = vand.u32 %v696, 2147483648
    %v1160 = vor.u32 1.1754944e-38, %v1159
    %v1161 = vsel %vm1158, %v1160, %v1156
    %v1162 = vmul.f32 1.0, %v1161
    %v1163 = vrcp.pop %v697
    %v1164 = vmul.f32 %v697, %v1163
    %v1165 = vsub.f32 1.0, %v1164
    %v1166 = vmul.f32 %v1163, %v1165
    %v1167 = vadd.f32 %v1163, %v1166
    %vm1168 = vweird.f32 %v697
    %vm1169 = vweird.f32 %v1163
    %vm1170 = vmor %vm1168, %vm1169
    %v1171 = vsel %vm1170, %v1163, %v1167
    %v1172 = vand.u32 2147483647, %v697
    %vm1173 = vcmp.eq.f32.partialorder %v1172, 8.507059e+37
    %v1174 = vand.u32 %v697, 2147483648
    %v1175 = vor.u32 1.1754944e-38, %v1174
    %v1176 = vsel %vm1173, %v1175, %v1171
    %v1177 = vmul.f32 1.0, %v1176
    %v1178 = vmul.f32 %v37, %v712
    %v1179 = vmul.f32 %v38, %v727
    %v1180 = vmul.f32 %v39, %v742
    %v1181 = vmul.f32 %v40, %v757
    %v1182 = vmul.f32 %v41, %v772
    %v1183 = vmul.f32 %v42, %v787
    %v1184 = vmul.f32 %v43, %v802
    %v1185 = vmul.f32 %v44, %v817
    %v1186 = vmul.f32 %v45, %v832
    %v1187 = vmul.f32 %v46, %v847
    %v1188 = vmul.f32 %v47, %v862
    %v1189 = vmul.f32 %v48, %v877
    %v1190 = vmul.f32 %v49, %v892
    %v1191 = vmul.f32 %v50, %v907
    %v1192 = vmul.f32 %v51, %v922
    %v1193 = vmul.f32 %v52, %v937
    %v1194 = vmul.f32 %v53, %v952
    %v1195 = vmul.f32 %v54, %v967
    %v1196 = vmul.f32 %v55, %v982
    %v1197 = vmul.f32 %v56, %v997
    %v1198 = vmul.f32 %v57, %v1012
    %v1199 = vmul.f32 %v58, %v1027
    %v1200 = vmul.f32 %v59, %v1042
    %v1201 = vmul.f32 %v60, %v1057
    %v1202 = vmul.f32 %v61, %v1072
    %v1203 = vmul.f32 %v62, %v1087
    %v1204 = vmul.f32 %v63, %v1102
    %v1205 = vmul.f32 %v64, %v1117
    %v1206 = vmul.f32 %v65, %v1132
    %v1207 = vmul.f32 %v66, %v1147
    %v1208 = vmul.f32 %v67, %v1162
    %v1209 = vmul.f32 %v68, %v1177
    %v1210 = vadd.f32 %v1178, %v197
    %v1211 = vadd.f32 %v1179, %v199
    %v1212 = vadd.f32 %v1180, %v202
    %v1213 = vadd.f32 %v1181, %v204
    %v1214 = vadd.f32 %v1182, %v207
    %v1215 = vadd.f32 %v1183, %v209
    %v1216 = vadd.f32 %v1184, %v212
    %v1217 = vadd.f32 %v1185, %v214
    %v1218 = vadd.f32 %v1186, %v217
    %v1219 = vadd.f32 %v1187, %v219
    %v1220 = vadd.f32 %v1188, %v222
    %v1221 = vadd.f32 %v1189, %v224
    %v1222 = vadd.f32 %v1190, %v227
    %v1223 = vadd.f32 %v1191, %v229
    %v1224 = vadd.f32 %v1192, %v232
    %v1225 = vadd.f32 %v1193, %v234
    %v1226 = vadd.f32 %v1194, %v237
    %v1227 = vadd.f32 %v1195, %v239
    %v1228 = vadd.f32 %v1196, %v242
    %v1229 = vadd.f32 %v1197, %v244
    %v1230 = vadd.f32 %v1198, %v247
    %v1231 = vadd.f32 %v1199, %v249
    %v1232 = vadd.f32 %v1200, %v252
    %v1233 = vadd.f32 %v1201, %v254
    %v1234 = vadd.f32 %v1202, %v257
    %v1235 = vadd.f32 %v1203, %v259
    %v1236 = vadd.f32 %v1204, %v262
    %v1237 = vadd.f32 %v1205, %v264
    %v1238 = vadd.f32 %v1206, %v267
    %v1239 = vadd.f32 %v1207, %v269
    %v1240 = vadd.f32 %v1208, %v272
    %v1241 = vadd.f32 %v1209, %v274
    %1242 = vst [vmem:[#allocation5] sm:$0xff] %v1210
    %1243 = vst [vmem:[#allocation5 + $0x8] sm:$0xff] %v1211
    %1244 = vst [vmem:[#allocation5 + $0x10] sm:$0xff] %v1212
    %1245 = vst [vmem:[#allocation5 + $0x18] sm:$0xff] %v1213
    %1246 = vst [vmem:[#allocation5 + $0x20] sm:$0xff] %v1214
    %1247 = vst [vmem:[#allocation5 + $0x28] sm:$0xff] %v1215
    %1248 = vst [vmem:[#allocation5 + $0x30] sm:$0xff] %v1216
    %1249 = vst [vmem:[#allocation5 + $0x38] sm:$0xff] %v1217
    %1250 = vst [vmem:[#allocation5 + $0x40] sm:$0xff] %v1218
    %1251 = vst [vmem:[#allocation5 + $0x48] sm:$0xff] %v1219
    %1252 = vst [vmem:[#allocation5 + $0x50] sm:$0xff] %v1220
    %1253 = vst [vmem:[#allocation5 + $0x58] sm:$0xff] %v1221
    %1254 = vst [vmem:[#allocation5 + $0x60] sm:$0xff] %v1222
    %1255 = vst [vmem:[#allocation5 + $0x68] sm:$0xff] %v1223
    %1256 = vst [vmem:[#allocation5 + $0x70] sm:$0xff] %v1224
    %1257 = vst [vmem:[#allocation5 + $0x78] sm:$0xff] %v1225
    %1258 = vst [vmem:[#allocation5 + $0x80] sm:$0xff] %v1226
    %1259 = vst [vmem:[#allocation5 + $0x88] sm:$0xff] %v1227
    %1260 = vst [vmem:[#allocation5 + $0x90] sm:$0xff] %v1228
    %1261 = vst [vmem:[#allocation5 + $0x98] sm:$0xff] %v1229
    %1262 = vst [vmem:[#allocation5 + $0xa0] sm:$0xff] %v1230
    %1263 = vst [vmem:[#allocation5 + $0xa8] sm:$0xff] %v1231
    %1264 = vst [vmem:[#allocation5 + $0xb0] sm:$0xff] %v1232
    %1265 = vst [vmem:[#allocation5 + $0xb8] sm:$0xff] %v1233
    %1266 = vst [vmem:[#allocation5 + $0xc0] sm:$0xff] %v1234
    %1267 = vst [vmem:[#allocation5 + $0xc8] sm:$0xff] %v1235
    %1268 = vst [vmem:[#allocation5 + $0xd0] sm:$0xff] %v1236
    %1269 = vst [vmem:[#allocation5 + $0xd8] sm:$0xff] %v1237
    %1270 = vst [vmem:[#allocation5 + $0xe0] sm:$0xff] %v1238
    %1271 = vst [vmem:[#allocation5 + $0xe8] sm:$0xff] %v1239
    %1272 = vst [vmem:[#allocation5 + $0xf0] sm:$0xff] %v1240
    %1273 = vst [vmem:[#allocation5 + $0xf8] sm:$0xff] %v1241
    // Predicated region
    $region26: #{tpu_custom_call.1} parent=1 // pred_check
      _
    $region27: #{tpu_custom_call.1} parent=1 // pred_check_branch
      %1275 = sbr.rel (0) target = $region29
    $region28: #{tpu_custom_call.1} parent=1 // pred_region
      %1277 = vsyncadd [#allocation4], 0
      %s1278 = sshll.u32 [#allocation5], 4
      %s1279 = int_to_ptr.vmem [resolvable:$true] %s1278
      %s1280 = sshll.u32 %s5, 4
      %s1281 = int_to_ptr.hbm [resolvable:$true] %s1280
      %1286 = dma.vmem_to_hbm [thread:$0]  %s1279, 4096, %s1281, [#allocation4], 128, 128, 8
    $region29: #{tpu_custom_call.1} parent=1 // pred_fallthru
      _
    // Predicated region
    $region30: #{tpu_custom_call.1} parent=1 // pred_check
      _
    $region31: #{tpu_custom_call.1} parent=1 // pred_check_branch
      %1288 = sbr.rel (0) target = $region33
    $region32: #{tpu_custom_call.1} parent=1 // pred_region
      %1290 = dma.done [#allocation4], 4096
    $region33: #{tpu_custom_call.1} parent=1 // pred_fallthru
      _
    %1291 = vsyncpa [#allocation3], 1
    %1292 = vsyncpa [#allocation4], 1

</llo_original>
